<compile_context>
chip_gen: v7x
topology: tpu7x:2x2x1
jax: 0.10.0
libtpu: 0.0.40
codegen_flags: <defaults>
</compile_context>

<pallas_src>
import functools
import math

import jax
import jax.numpy as jnp
from jax.experimental import pallas as pl
from jax.experimental.pallas import tpu as pltpu

_EPS = 1e-5


def _layernorm_kernel(x_ref, w_ref, b_ref, o_ref, *, c):
    """x_ref/o_ref: (tile_rows, width); w_ref/b_ref: (1, width); width = k*c.

    Each width-wide row holds k independent, contiguous segments of c channels;
    every segment is one original LayerNorm row.
    """
    x = x_ref[...].astype(jnp.float32)
    w = w_ref[...].astype(jnp.float32)
    b = b_ref[...].astype(jnp.float32)
    width = x.shape[-1]
    k = width // c

    if k == 1:
        mu = jnp.mean(x, axis=-1, keepdims=True)
        d = x - mu
        var = jnp.mean(d * d, axis=-1, keepdims=True)       # biased variance
    else:
        inv_c = jnp.float32(1.0 / c)
        dot = functools.partial(jnp.dot, preferred_element_type=jnp.float32,
                                precision=jax.lax.Precision.HIGHEST)
        # 0/1 segment-indicator matrices (no integer division needed):
        #   s [l, j] = 1 iff lane l belongs to segment j   -> (width, k)
        #   st[j, l] = 1 iff lane l belongs to segment j   -> (k, width)
        li = jax.lax.broadcasted_iota(jnp.int32, (width, k), 0)
        sj = jax.lax.broadcasted_iota(jnp.int32, (width, k), 1) * c
        s = ((li >= sj) & (li < sj + c)).astype(jnp.float32)
        lj = jax.lax.broadcasted_iota(jnp.int32, (k, width), 1)
        si = jax.lax.broadcasted_iota(jnp.int32, (k, width), 0) * c
        st = ((lj >= si) & (lj < si + c)).astype(jnp.float32)

        # Segmented reduce + broadcast on the (otherwise idle) MXU, exact f32.
        mu = dot(dot(x, s) * inv_c, st)                      # per-segment mean
        d = x - mu
        var = dot(dot(d * d, s) * inv_c, st)                 # biased variance

    y = d * jax.lax.rsqrt(var + _EPS)                        # EUP rsqrt
    o_ref[...] = (y * w + b).astype(o_ref.dtype)


def _num_tensorcores():
    """Best-effort TensorCore count of the local device (megacore balance)."""
    try:
        dev = jax.devices()[0]
        for attr in ("num_cores", "core_count"):
            v = getattr(dev, attr, None)
            if isinstance(v, int) and 0 < v <= 8:
                return v
        if "v7" in str(getattr(dev, "device_kind", "")).lower():
            return 2
    except Exception:
        pass
    return 1


def withbias_layernorm(x, weight, bias):
    """LayerNorm over the last axis with affine weight/bias, eps=1e-5.

    x: (..., C) array.  weight, bias: (C,).  Matches WithBias_LayerNorm.forward.
    """
    orig_shape = x.shape
    C = orig_shape[-1]
    rows = max(1, math.prod(orig_shape[:-1]))
    dtype_bytes = jnp.dtype(x.dtype).itemsize
    sub = max(8, 32 // dtype_bytes)          # sublane multiple for this dtype

    # ---- lane-dense packing (never take the masked-store path) --------------
    pack, pad_rows = 1, 0
    if C % 128 != 0:
        k_min = 128 // math.gcd(C, 128)      # smallest k with (k*C) % 128 == 0
        k_pref = k_min
        while k_pref * C < 256:              # prefer >= 2 full vregs of lanes
            k_pref *= 2
        candidates = [k_pref] if k_pref == k_min else [k_pref, k_min]
        pack = next((k for k in candidates if rows % k == 0), 0)
        if pack == 0:
            pack = k_pref                    # pad a few rows rather than fall
            pad_rows = (-rows) % pack        # into the lane-sparse fallback

    x2 = x.reshape(rows, C)
    if pad_rows:
        x2 = jnp.pad(x2, ((0, pad_rows), (0, 0)))
    rows_p = rows + pad_rows

    if pack > 1:
        width = pack * C
        n_rows = rows_p // pack
        x2 = x2.reshape(n_rows, width)       # free (row-major) reshape
        w2 = jnp.tile(weight.reshape(-1), pack).reshape(1, width)
        b2 = jnp.tile(bias.reshape(-1), pack).reshape(1, width)
    else:
        width = C
        n_rows = rows_p
        w2 = weight.reshape(1, width)
        b2 = bias.reshape(1, width)

    # ---- row-tile selection (HBM-bound: big blocks, v7x-safe VMEM budget) ---
    # Budget covers double-buffered input+output blocks (native dtype) plus
    # ~3 full-block f32 temporaries used inside the kernel.
    budget = 44 << 20
    per_row = width * (4 * dtype_bytes + 3 * 4)
    tr = max(sub, (budget // per_row) // sub * sub)
    row_bytes = width * dtype_bytes
    if tr >= n_rows:
        if (_num_tensorcores() > 1 and n_rows * row_bytes >= (1 << 20)
                and n_rows > sub):
            # Split into ~4 near-equal blocks so both TensorCores stay busy.
            q = -(-n_rows // 4)
            tr = -(-q // sub) * sub
        else:
            tr = n_rows                      # single full-extent block (legal)
    grid = (pl.cdiv(n_rows, tr),)            # ragged last block masked by Pallas

    block_native = tr * width * dtype_bytes
    block_f32 = tr * width * 4
    vmem_limit = int(min(52 << 20,
                         max(24 << 20, 4 * block_native + 3 * block_f32 + (4 << 20))))

    out = pl.pallas_call(
        functools.partial(_layernorm_kernel, c=C),
        out_shape=jax.ShapeDtypeStruct((n_rows, width), x.dtype),
        grid_spec=pltpu.PrefetchScalarGridSpec(
            num_scalar_prefetch=0,
            grid=grid,
            in_specs=[
                pl.BlockSpec((tr, width), lambda i: (i, 0)),
                pl.BlockSpec((1, width), lambda i: (0, 0)),
                pl.BlockSpec((1, width), lambda i: (0, 0)),
            ],
            out_specs=pl.BlockSpec((tr, width), lambda i: (i, 0)),
        ),
        compiler_params=pltpu.CompilerParams(
            dimension_semantics=("parallel",),
            vmem_limit_bytes=vmem_limit,
        ),
    )(x2, w2, b2)

    out = out.reshape(rows_p, C)
    if pad_rows:
        out = out[:rows]
    return out.reshape(orig_shape)


def _reference(x, weight, bias):
    mu = jnp.mean(x, axis=-1, keepdims=True)
    var = jnp.mean((x - mu) ** 2, axis=-1, keepdims=True)
    return (x - mu) / jnp.sqrt(var + _EPS) * weight + bias


if __name__ == "__main__":
    key = jax.random.PRNGKey(0)
    k1, k2, k3, k4 = jax.random.split(key, 4)

    # Case 1 — Restormer-style (B, H*W, C), small C: packed lane-dense path
    # (C=32 -> pack=8, 256-wide super-rows), rows divisible by the pack factor.
    B, H, W, C = 2, 8, 8, 32
    x = jax.random.normal(k1, (B, H * W, C), dtype=jnp.float32)
    weight = 1.0 + 0.1 * jax.random.normal(k2, (C,), dtype=jnp.float32)
    bias = jnp.linspace(-0.5, 0.5, C, dtype=jnp.float32)
    out = jax.block_until_ready(withbias_layernorm(x, weight, bias))
    assert out.shape == x.shape and out.dtype == x.dtype
    assert jnp.allclose(out, _reference(x, weight, bias), atol=1e-4, rtol=1e-4), \
        "packed-path mismatch vs reference"

    # Case 2 — C already a multiple of 128 (lane-dense as-is): plain k==1 path.
    C2 = 384
    x2 = jax.random.normal(k3, (2, 16, C2), dtype=jnp.float32)
    w2 = jnp.ones((C2,), dtype=jnp.float32)
    b2 = jnp.zeros((C2,), dtype=jnp.float32)
    out2 = jax.block_until_ready(withbias_layernorm(x2, w2, b2))
    assert jnp.allclose(out2, _reference(x2, w2, b2), atol=1e-4, rtol=1e-4), \
        "plain-path mismatch vs reference"

    # Case 3 — rows NOT divisible by the pack factor (C=48 -> pack=8, rows=70):
    # exercises the row-padding path that replaces the old lane-sparse fallback.
    C3 = 48
    x3 = jax.random.normal(k4, (2, 5, 7, C3), dtype=jnp.float32)
    w3 = 1.0 + 0.05 * jnp.cos(jnp.arange(C3, dtype=jnp.float32))
    b3 = 0.1 * jnp.sin(jnp.arange(C3, dtype=jnp.float32))
    out3 = jax.block_until_ready(withbias_layernorm(x3, w3, b3))
    assert out3.shape == x3.shape
    assert jnp.allclose(out3, _reference(x3, w3, b3), atol=1e-4, rtol=1e-4), \
        "padded-path mismatch vs reference"

    print("KERNEL_OK")
</pallas_src>

<mosaic_0001>
module attributes {stable_mosaic.version = 11 : i64} {
  func.func @_layernorm_kernel(%arg0: i32, %arg1: memref<16x256xf32, #tpu.memory_space<vmem>>, %arg2: memref<1x256xf32, #tpu.memory_space<vmem>>, %arg3: memref<1x256xf32, #tpu.memory_space<vmem>>, %arg4: memref<16x256xf32, #tpu.memory_space<vmem>>) attributes {dimension_semantics = [#tpu.dimension_semantics<parallel>], iteration_bounds = array<i64: 1>, scalar_prefetch = 0 : i64, scratch_operands = 0 : i64, tpu.core_type = #tpu.core_type<tc>, window_params = [{transform_indices = @transform_0, window_bounds = array<i64: 16, 256>}, {pipeline_mode = #tpu.pipeline_mode<synchronous>, transform_indices = @transform_1, window_bounds = array<i64: 1, 256>}, {pipeline_mode = #tpu.pipeline_mode<synchronous>, transform_indices = @transform_2, window_bounds = array<i64: 1, 256>}, {transform_indices = @transform_3, window_bounds = array<i64: 16, 256>}]} {
    %c0 = arith.constant 0 : index
    %c0_0 = arith.constant 0 : index
    %0 = vector.load %arg1[%c0, %c0_0] : memref<16x256xf32, #tpu.memory_space<vmem>>, vector<16x256xf32>
    %c0_1 = arith.constant 0 : index
    %c0_2 = arith.constant 0 : index
    %1 = vector.load %arg2[%c0_1, %c0_2] : memref<1x256xf32, #tpu.memory_space<vmem>>, vector<1x256xf32>
    %c0_3 = arith.constant 0 : index
    %c0_4 = arith.constant 0 : index
    %2 = vector.load %arg3[%c0_3, %c0_4] : memref<1x256xf32, #tpu.memory_space<vmem>>, vector<1x256xf32>
    %3 = tpu.iota {dimensions = array<i32: 0>} : vector<256x8xi32>
    %4 = tpu.iota {dimensions = array<i32: 1>} : vector<256x8xi32>
    %c32_i32 = arith.constant 32 : i32
    %5 = vector.broadcast %c32_i32 : i32 to vector<256x8xi32>
    %6 = arith.muli %4, %5 : vector<256x8xi32>
    %7 = arith.cmpi sge, %3, %6 : vector<256x8xi32>
    %c32_i32_5 = arith.constant 32 : i32
    %8 = vector.broadcast %c32_i32_5 : i32 to vector<256x8xi32>
    %9 = arith.addi %6, %8 : vector<256x8xi32>
    %10 = arith.cmpi slt, %3, %9 : vector<256x8xi32>
    %11 = arith.andi %7, %10 : vector<256x8xi1>
    %12 = arith.extui %11 : vector<256x8xi1> to vector<256x8xi32>
    %13 = arith.sitofp %12 : vector<256x8xi32> to vector<256x8xf32>
    %14 = tpu.iota {dimensions = array<i32: 1>} : vector<8x256xi32>
    %15 = tpu.iota {dimensions = array<i32: 0>} : vector<8x256xi32>
    %c32_i32_6 = arith.constant 32 : i32
    %16 = vector.broadcast %c32_i32_6 : i32 to vector<8x256xi32>
    %17 = arith.muli %15, %16 : vector<8x256xi32>
    %18 = arith.cmpi sge, %14, %17 : vector<8x256xi32>
    %c32_i32_7 = arith.constant 32 : i32
    %19 = vector.broadcast %c32_i32_7 : i32 to vector<8x256xi32>
    %20 = arith.addi %17, %19 : vector<8x256xi32>
    %21 = arith.cmpi slt, %14, %20 : vector<8x256xi32>
    %22 = arith.andi %18, %21 : vector<8x256xi1>
    %23 = arith.extui %22 : vector<8x256xi1> to vector<8x256xi32>
    %24 = arith.sitofp %23 : vector<8x256xi32> to vector<8x256xf32>
    %cst = arith.constant dense<0.000000e+00> : vector<16x8xf32>
    %25 = tpu.matmul %0, %13, %cst {dimension_numbers = #tpu.dot_dimension_numbers<[1], [0], [0], [1], [0, 0, 1, 1], [], []>, precision = #tpu.contract_precision<fp32>} : vector<16x256xf32>, vector<256x8xf32>, vector<16x8xf32> -> vector<16x8xf32>
    %cst_8 = arith.constant 3.125000e-02 : f32
    %26 = vector.broadcast %cst_8 : f32 to vector<16x8xf32>
    %27 = arith.mulf %25, %26 : vector<16x8xf32>
    %cst_9 = arith.constant dense<0.000000e+00> : vector<16x256xf32>
    %28 = tpu.matmul %27, %24, %cst_9 {dimension_numbers = #tpu.dot_dimension_numbers<[1], [0], [0], [1], [0, 0, 1, 1], [], []>, precision = #tpu.contract_precision<fp32>} : vector<16x8xf32>, vector<8x256xf32>, vector<16x256xf32> -> vector<16x256xf32>
    %29 = arith.subf %0, %28 : vector<16x256xf32>
    %30 = arith.mulf %29, %29 : vector<16x256xf32>
    %cst_10 = arith.constant dense<0.000000e+00> : vector<16x8xf32>
    %31 = tpu.matmul %30, %13, %cst_10 {dimension_numbers = #tpu.dot_dimension_numbers<[1], [0], [0], [1], [0, 0, 1, 1], [], []>, precision = #tpu.contract_precision<fp32>} : vector<16x256xf32>, vector<256x8xf32>, vector<16x8xf32> -> vector<16x8xf32>
    %cst_11 = arith.constant 3.125000e-02 : f32
    %32 = vector.broadcast %cst_11 : f32 to vector<16x8xf32>
    %33 = arith.mulf %31, %32 : vector<16x8xf32>
    %cst_12 = arith.constant dense<0.000000e+00> : vector<16x256xf32>
    %34 = tpu.matmul %33, %24, %cst_12 {dimension_numbers = #tpu.dot_dimension_numbers<[1], [0], [0], [1], [0, 0, 1, 1], [], []>, precision = #tpu.contract_precision<fp32>} : vector<16x8xf32>, vector<8x256xf32>, vector<16x256xf32> -> vector<16x256xf32>
    %cst_13 = arith.constant 9.99999974E-6 : f32
    %35 = vector.broadcast %cst_13 : f32 to vector<16x256xf32>
    %36 = arith.addf %34, %35 : vector<16x256xf32>
    %37 = math.rsqrt %36 : vector<16x256xf32>
    %38 = arith.mulf %29, %37 : vector<16x256xf32>
    %39 = vector.broadcast %1 : vector<1x256xf32> to vector<16x256xf32>
    %40 = arith.mulf %38, %39 : vector<16x256xf32>
    %41 = vector.broadcast %2 : vector<1x256xf32> to vector<16x256xf32>
    %42 = arith.addf %40, %41 : vector<16x256xf32>
    %c0_14 = arith.constant 0 : index
    %c0_15 = arith.constant 0 : index
    %43 = vector.load %arg4[%c0_14, %c0_15] : memref<16x256xf32, #tpu.memory_space<vmem>>, vector<16x256xf32>
    tpu.vector_store %arg4[%c0_14, %c0_15], %42 {strides = array<i32>} : memref<16x256xf32, #tpu.memory_space<vmem>>, vector<16x256xf32>,
    return
  }
  func.func @transform_0(%arg0: i32) -> (i32, i32) {
    %c0_i32 = arith.constant 0 : i32
    %c0_i32_0 = arith.constant 0 : i32
    return %arg0, %c0_i32 : i32, i32
  }
  func.func @transform_1(%arg0: i32) -> (i32, i32) {
    %c0_i32 = arith.constant 0 : i32
    %c0_i32_0 = arith.constant 0 : i32
    %c0_i32_1 = arith.constant 0 : i32
    return %c0_i32, %c0_i32_0 : i32, i32
  }
  func.func @transform_2(%arg0: i32) -> (i32, i32) {
    %c0_i32 = arith.constant 0 : i32
    %c0_i32_0 = arith.constant 0 : i32
    %c0_i32_1 = arith.constant 0 : i32
    return %c0_i32, %c0_i32_0 : i32, i32
  }
  func.func @transform_3(%arg0: i32) -> (i32, i32) {
    %c0_i32 = arith.constant 0 : i32
    %c0_i32_0 = arith.constant 0 : i32
    return %arg0, %c0_i32 : i32, i32
  }
}

</mosaic_0001>

<llo_original>
// kernel: tpu_custom_call.1
$region0: #{tpu_custom_call.1}
  #allocation0 [shape = 'u32[]', space=smem, size = 0x4, offset = 0x4, fixed_abs, tag = 'smem constant byte address 0x4 - core index']
  #allocation1 [shape = 'u32[144,128]{1,0:T(1,128)}', space=vmem, size = 0x12000, scoped, tag = 'internal scratch']
  %s0 = inlined_call_operand.hbm [shape: f32[16,256], index: 0, kind: input, shape index: {}]
  %s1 = inlined_call_operand.vmem [shape: f32[1,256], index: 1, kind: input, shape index: {}]
  %s2 = inlined_call_operand.vmem [shape: f32[1,256], index: 2, kind: input, shape index: {}]
  %s3 = inlined_call_operand.hbm [shape: f32[16,256], index: 3, kind: output, shape index: {}]
  %s4 = sld [smem:[#allocation0]]
  $region26: #{tpu_custom_call.1} parent=0
    _
  %s6 = ssub.s32 1, %s4
  %s7 = scalar_select 0, %s6, %s4
  $region1: #{tpu_custom_call.1} parent=0
    #allocation2 [shape = 'u8[16384]{0}', space=vmem, size = 0x4000, scoped, tag = 'input window, operand 0, single buffered']
    #allocation3 [shape = 's32[1]{0}', space=sflag, size = 0x4, scoped, tag = 'scoped memory for tpu_custom_call.1']
    #allocation4 [shape = 's32[1]{0}', space=sflag, size = 0x4, scoped, tag = 'scoped memory for tpu_custom_call.1']
    #allocation5 [shape = 'u8[16384]{0}', space=vmem, size = 0x4000, scoped, tag = 'output window, operand 0, single buffered']
    %8 = vsyncpa [#allocation3], 0
    %9 = vsyncpa [#allocation4], 0
    // Predicated region
    $region2: #{tpu_custom_call.1} parent=1 // pred_check
      _
    $region3: #{tpu_custom_call.1} parent=1 // pred_check_branch
      %11 = sbr.rel (0) target = $region5
    $region4: #{tpu_custom_call.1} parent=1 // pred_region
      %s13 = ssub.s32 512, 512
      %14 = vsyncadd [#allocation3], %s13
      %s15 = sshll.u32 [#allocation2], 4
      %s16 = int_to_ptr.vmem [resolvable:$true] %s15
      %21 = dma.hbm_to_vmem [thread:$0]  %s0, 512, %s16, [#allocation3], 256, 256, 16
    $region5: #{tpu_custom_call.1} parent=1 // pred_fallthru
      _
    // Predicated region
    $region6: #{tpu_custom_call.1} parent=1 // pred_check
      _
    $region7: #{tpu_custom_call.1} parent=1 // pred_check_branch
      %23 = sbr.rel (0) target = $region9
    $region8: #{tpu_custom_call.1} parent=1 // pred_region
      _
    $region9: #{tpu_custom_call.1} parent=1 // pred_fallthru
      _
    // Predicated region
    $region10: #{tpu_custom_call.1} parent=1 // pred_check
      _
    $region11: #{tpu_custom_call.1} parent=1 // pred_check_branch
      %25 = sbr.rel (0) target = $region13
    $region12: #{tpu_custom_call.1} parent=1 // pred_region
      _
    $region13: #{tpu_custom_call.1} parent=1 // pred_fallthru
      _
    // Predicated region
    $region14: #{tpu_custom_call.1} parent=1 // pred_check
      _
    $region15: #{tpu_custom_call.1} parent=1 // pred_check_branch
      %27 = sbr.rel (0) target = $region17
    $region16: #{tpu_custom_call.1} parent=1 // pred_region
      %28 = dma.done [#allocation3], 512
    $region17: #{tpu_custom_call.1} parent=1 // pred_fallthru
      _
    %v29 = vld [vmem:[#allocation2] sm:$0xff]
    %v30 = vld [vmem:[#allocation2 + $0x8] sm:$0xff]
    %v31 = vld [vmem:[#allocation2 + $0x10] sm:$0xff]
    %v32 = vld [vmem:[#allocation2 + $0x18] sm:$0xff]
    %v33 = vld [vmem:[%s1] sm:$0x3]
    %v34 = vld [vmem:[%s2] sm:$0x3]
    %v35 = vlaneseq
    %v36 = vshrl.u32 %v35, 7
    %v37 = vadd.s32 %v36, 8
    %v38 = vadd.s32 %v36, 16
    %v39 = vadd.s32 %v36, 24
    %v40 = vadd.s32 %v36, 32
    %v41 = vadd.s32 %v36, 40
    %v42 = vadd.s32 %v36, 48
    %v43 = vadd.s32 %v36, 56
    %v44 = vadd.s32 %v36, 64
    %v45 = vadd.s32 %v36, 72
    %v46 = vadd.s32 %v36, 80
    %v47 = vadd.s32 %v36, 88
    %v48 = vadd.s32 %v36, 96
    %v49 = vadd.s32 %v36, 104
    %v50 = vadd.s32 %v36, 112
    %v51 = vadd.s32 %v36, 120
    %v52 = vadd.s32 %v36, 128
    %v53 = vadd.s32 %v36, 136
    %v54 = vadd.s32 %v36, 144
    %v55 = vadd.s32 %v36, 152
    %v56 = vadd.s32 %v36, 160
    %v57 = vadd.s32 %v36, 168
    %v58 = vadd.s32 %v36, 176
    %v59 = vadd.s32 %v36, 184
    %v60 = vadd.s32 %v36, 192
    %v61 = vadd.s32 %v36, 200
    %v62 = vadd.s32 %v36, 208
    %v63 = vadd.s32 %v36, 216
    %v64 = vadd.s32 %v36, 224
    %v65 = vadd.s32 %v36, 232
    %v66 = vadd.s32 %v36, 240
    %v67 = vadd.s32 %v36, 248
    %v68 = vlaneseq
    %v69 = vand.u32 %v68, 127
    %v70 = vmul.u32 %v69, 32
    %vm71 = vcmp.ge.s32.totalorder %v36, %v70
    %vm72 = vcmp.ge.s32.totalorder %v37, %v70
    %vm73 = vcmp.ge.s32.totalorder %v38, %v70
    %vm74 = vcmp.ge.s32.totalorder %v39, %v70
    %vm75 = vcmp.ge.s32.totalorder %v40, %v70
    %vm76 = vcmp.ge.s32.totalorder %v41, %v70
    %vm77 = vcmp.ge.s32.totalorder %v42, %v70
    %vm78 = vcmp.ge.s32.totalorder %v43, %v70
    %vm79 = vcmp.ge.s32.totalorder %v44, %v70
    %vm80 = vcmp.ge.s32.totalorder %v45, %v70
    %vm81 = vcmp.ge.s32.totalorder %v46, %v70
    %vm82 = vcmp.ge.s32.totalorder %v47, %v70
    %vm83 = vcmp.ge.s32.totalorder %v48, %v70
    %vm84 = vcmp.ge.s32.totalorder %v49, %v70
    %vm85 = vcmp.ge.s32.totalorder %v50, %v70
    %vm86 = vcmp.ge.s32.totalorder %v51, %v70
    %vm87 = vcmp.ge.s32.totalorder %v52, %v70
    %vm88 = vcmp.ge.s32.totalorder %v53, %v70
    %vm89 = vcmp.ge.s32.totalorder %v54, %v70
    %vm90 = vcmp.ge.s32.totalorder %v55, %v70
    %vm91 = vcmp.ge.s32.totalorder %v56, %v70
    %vm92 = vcmp.ge.s32.totalorder %v57, %v70
    %vm93 = vcmp.ge.s32.totalorder %v58, %v70
    %vm94 = vcmp.ge.s32.totalorder %v59, %v70
    %vm95 = vcmp.ge.s32.totalorder %v60, %v70
    %vm96 = vcmp.ge.s32.totalorder %v61, %v70
    %vm97 = vcmp.ge.s32.totalorder %v62, %v70
    %vm98 = vcmp.ge.s32.totalorder %v63, %v70
    %vm99 = vcmp.ge.s32.totalorder %v64, %v70
    %vm100 = vcmp.ge.s32.totalorder %v65, %v70
    %vm101 = vcmp.ge.s32.totalorder %v66, %v70
    %vm102 = vcmp.ge.s32.totalorder %v67, %v70
    %v103 = vadd.s32 %v70, 32
    %vm104 = vcmp.lt.s32.totalorder %v36, %v103
    %vm105 = vcmp.lt.s32.totalorder %v37, %v103
    %vm106 = vcmp.lt.s32.totalorder %v38, %v103
    %vm107 = vcmp.lt.s32.totalorder %v39, %v103
    %vm108 = vcmp.lt.s32.totalorder %v40, %v103
    %vm109 = vcmp.lt.s32.totalorder %v41, %v103
    %vm110 = vcmp.lt.s32.totalorder %v42, %v103
    %vm111 = vcmp.lt.s32.totalorder %v43, %v103
    %vm112 = vcmp.lt.s32.totalorder %v44, %v103
    %vm113 = vcmp.lt.s32.totalorder %v45, %v103
    %vm114 = vcmp.lt.s32.totalorder %v46, %v103
    %vm115 = vcmp.lt.s32.totalorder %v47, %v103
    %vm116 = vcmp.lt.s32.totalorder %v48, %v103
    %vm117 = vcmp.lt.s32.totalorder %v49, %v103
    %vm118 = vcmp.lt.s32.totalorder %v50, %v103
    %vm119 = vcmp.lt.s32.totalorder %v51, %v103
    %vm120 = vcmp.lt.s32.totalorder %v52, %v103
    %vm121 = vcmp.lt.s32.totalorder %v53, %v103
    %vm122 = vcmp.lt.s32.totalorder %v54, %v103
    %vm123 = vcmp.lt.s32.totalorder %v55, %v103
    %vm124 = vcmp.lt.s32.totalorder %v56, %v103
    %vm125 = vcmp.lt.s32.totalorder %v57, %v103
    %vm126 = vcmp.lt.s32.totalorder %v58, %v103
    %vm127 = vcmp.lt.s32.totalorder %v59, %v103
    %vm128 = vcmp.lt.s32.totalorder %v60, %v103
    %vm129 = vcmp.lt.s32.totalorder %v61, %v103
    %vm130 = vcmp.lt.s32.totalorder %v62, %v103
    %vm131 = vcmp.lt.s32.totalorder %v63, %v103
    %vm132 = vcmp.lt.s32.totalorder %v64, %v103
    %vm133 = vcmp.lt.s32.totalorder %v65, %v103
    %vm134 = vcmp.lt.s32.totalorder %v66, %v103
    %vm135 = vcmp.lt.s32.totalorder %v67, %v103
    %vm136 = vmand %vm71, %vm104
    %vm137 = vmand %vm72, %vm105
    %vm138 = vmand %vm73, %vm106
    %vm139 = vmand %vm74, %vm107
    %vm140 = vmand %vm75, %vm108
    %vm141 = vmand %vm76, %vm109
    %vm142 = vmand %vm77, %vm110
    %vm143 = vmand %vm78, %vm111
    %vm144 = vmand %vm79, %vm112
    %vm145 = vmand %vm80, %vm113
    %vm146 = vmand %vm81, %vm114
    %vm147 = vmand %vm82, %vm115
    %vm148 = vmand %vm83, %vm116
    %vm149 = vmand %vm84, %vm117
    %vm150 = vmand %vm85, %vm118
    %vm151 = vmand %vm86, %vm119
    %vm152 = vmand %vm87, %vm120
    %vm153 = vmand %vm88, %vm121
    %vm154 = vmand %vm89, %vm122
    %vm155 = vmand %vm90, %vm123
    %vm156 = vmand %vm91, %vm124
    %vm157 = vmand %vm92, %vm125
    %vm158 = vmand %vm93, %vm126
    %vm159 = vmand %vm94, %vm127
    %vm160 = vmand %vm95, %vm128
    %vm161 = vmand %vm96, %vm129
    %vm162 = vmand %vm97, %vm130
    %vm163 = vmand %vm98, %vm131
    %vm164 = vmand %vm99, %vm132
    %vm165 = vmand %vm100, %vm133
    %vm166 = vmand %vm101, %vm134
    %vm167 = vmand %vm102, %vm135
    %v168 = vsel %vm136, 1, 0
    %v169 = vsel %vm137, 1, 0
    %v170 = vsel %vm138, 1, 0
    %v171 = vsel %vm139, 1, 0
    %v172 = vsel %vm140, 1, 0
    %v173 = vsel %vm141, 1, 0
    %v174 = vsel %vm142, 1, 0
    %v175 = vsel %vm143, 1, 0
    %v176 = vsel %vm144, 1, 0
    %v177 = vsel %vm145, 1, 0
    %v178 = vsel %vm146, 1, 0
    %v179 = vsel %vm147, 1, 0
    %v180 = vsel %vm148, 1, 0
    %v181 = vsel %vm149, 1, 0
    %v182 = vsel %vm150, 1, 0
    %v183 = vsel %vm151, 1, 0
    %v184 = vsel %vm152, 1, 0
    %v185 = vsel %vm153, 1, 0
    %v186 = vsel %vm154, 1, 0
    %v187 = vsel %vm155, 1, 0
    %v188 = vsel %vm156, 1, 0
    %v189 = vsel %vm157, 1, 0
    %v190 = vsel %vm158, 1, 0
    %v191 = vsel %vm159, 1, 0
    %v192 = vsel %vm160, 1, 0
    %v193 = vsel %vm161, 1, 0
    %v194 = vsel %vm162, 1, 0
    %v195 = vsel %vm163, 1, 0
    %v196 = vsel %vm164, 1, 0
    %v197 = vsel %vm165, 1, 0
    %v198 = vsel %vm166, 1, 0
    %v199 = vsel %vm167, 1, 0
    %v200 = vcvt.s32.f32 %v168
    %v201 = vcvt.s32.f32 %v169
    %v202 = vcvt.s32.f32 %v170
    %v203 = vcvt.s32.f32 %v171
    %v204 = vcvt.s32.f32 %v172
    %v205 = vcvt.s32.f32 %v173
    %v206 = vcvt.s32.f32 %v174
    %v207 = vcvt.s32.f32 %v175
    %v208 = vcvt.s32.f32 %v176
    %v209 = vcvt.s32.f32 %v177
    %v210 = vcvt.s32.f32 %v178
    %v211 = vcvt.s32.f32 %v179
    %v212 = vcvt.s32.f32 %v180
    %v213 = vcvt.s32.f32 %v181
    %v214 = vcvt.s32.f32 %v182
    %v215 = vcvt.s32.f32 %v183
    %v216 = vcvt.s32.f32 %v184
    %v217 = vcvt.s32.f32 %v185
    %v218 = vcvt.s32.f32 %v186
    %v219 = vcvt.s32.f32 %v187
    %v220 = vcvt.s32.f32 %v188
    %v221 = vcvt.s32.f32 %v189
    %v222 = vcvt.s32.f32 %v190
    %v223 = vcvt.s32.f32 %v191
    %v224 = vcvt.s32.f32 %v192
    %v225 = vcvt.s32.f32 %v193
    %v226 = vcvt.s32.f32 %v194
    %v227 = vcvt.s32.f32 %v195
    %v228 = vcvt.s32.f32 %v196
    %v229 = vcvt.s32.f32 %v197
    %v230 = vcvt.s32.f32 %v198
    %v231 = vcvt.s32.f32 %v199
    %v232 = vadd.s32 %v69, 128
    %v233 = vmul.u32 %v36, 32
    %vm234 = vcmp.ge.s32.totalorder %v69, %v233
    %vm235 = vcmp.ge.s32.totalorder %v232, %v233
    %v236 = vadd.s32 %v233, 32
    %vm237 = vcmp.lt.s32.totalorder %v69, %v236
    %vm238 = vcmp.lt.s32.totalorder %v232, %v236
    %vm239 = vmand %vm234, %vm237
    %vm240 = vmand %vm235, %vm238
    %v241 = vsel %vm239, 1, 0
    %v242 = vsel %vm240, 1, 0
    %v243 = vcvt.s32.f32 %v241
    %v244 = vcvt.s32.f32 %v242
    %245 = vmatprep.subr.mxu0 0.0
    %v246 = vand.u32 %v200, 4294901760
    %247 = vmatpush1.msra.mxu0 %v246
    %248 = vmatprep.subr.mxu0 0.0
    %v249 = vand.u32 %v201, 4294901760
    %250 = vmatpush1.msra.mxu0 %v249
    %251 = vmatprep.subr.mxu0 0.0
    %v252 = vand.u32 %v202, 4294901760
    %253 = vmatpush1.msra.mxu0 %v252
    %254 = vmatprep.subr.mxu0 0.0
    %v255 = vand.u32 %v203, 4294901760
    %256 = vmatpush1.msra.mxu0 %v255
    %257 = vmatprep.subr.mxu0 0.0
    %v258 = vand.u32 %v204, 4294901760
    %259 = vmatpush1.msra.mxu0 %v258
    %260 = vmatprep.subr.mxu0 0.0
    %v261 = vand.u32 %v205, 4294901760
    %262 = vmatpush1.msra.mxu0 %v261
    %263 = vmatprep.subr.mxu0 0.0
    %v264 = vand.u32 %v206, 4294901760
    %265 = vmatpush1.msra.mxu0 %v264
    %266 = vmatprep.subr.mxu0 0.0
    %v267 = vand.u32 %v207, 4294901760
    %268 = vmatpush1.msra.mxu0 %v267
    %269 = vmatprep.subr.mxu0 0.0
    %v270 = vand.u32 %v208, 4294901760
    %271 = vmatpush1.msra.mxu0 %v270
    %272 = vmatprep.subr.mxu0 0.0
    %v273 = vand.u32 %v209, 4294901760
    %274 = vmatpush1.msra.mxu0 %v273
    %275 = vmatprep.subr.mxu0 0.0
    %v276 = vand.u32 %v210, 4294901760
    %277 = vmatpush1.msra.mxu0 %v276
    %278 = vmatprep.subr.mxu0 0.0
    %v279 = vand.u32 %v211, 4294901760
    %280 = vmatpush1.msra.mxu0 %v279
    %281 = vmatprep.subr.mxu0 0.0
    %v282 = vand.u32 %v212, 4294901760
    %283 = vmatpush1.msra.mxu0 %v282
    %284 = vmatprep.subr.mxu0 0.0
    %v285 = vand.u32 %v213, 4294901760
    %286 = vmatpush1.msra.mxu0 %v285
    %287 = vmatprep.subr.mxu0 0.0
    %v288 = vand.u32 %v214, 4294901760
    %289 = vmatpush1.msra.mxu0 %v288
    %290 = vmatprep.subr.mxu0 0.0
    %v291 = vand.u32 %v215, 4294901760
    %292 = vmatpush1.msra.mxu0 %v291
    %293 = vmatprep.subr.mxu0 0.0
    %v294 = vand.u32 %v216, 4294901760
    %295 = vmatpush1.msra.mxu0 %v294
    %296 = vmatprep.subr.mxu0 0.0
    %v297 = vand.u32 %v217, 4294901760
    %298 = vmatpush1.msra.mxu0 %v297
    %299 = vmatprep.subr.mxu0 0.0
    %v300 = vand.u32 %v218, 4294901760
    %301 = vmatpush1.msra.mxu0 %v300
    %302 = vmatprep.subr.mxu0 0.0
    %v303 = vand.u32 %v219, 4294901760
    %304 = vmatpush1.msra.mxu0 %v303
    %305 = vmatprep.subr.mxu0 0.0
    %v306 = vand.u32 %v220, 4294901760
    %307 = vmatpush1.msra.mxu0 %v306
    %308 = vmatprep.subr.mxu0 0.0
    %v309 = vand.u32 %v221, 4294901760
    %310 = vmatpush1.msra.mxu0 %v309
    %311 = vmatprep.subr.mxu0 0.0
    %v312 = vand.u32 %v222, 4294901760
    %313 = vmatpush1.msra.mxu0 %v312
    %314 = vmatprep.subr.mxu0 0.0
    %v315 = vand.u32 %v223, 4294901760
    %316 = vmatpush1.msra.mxu0 %v315
    %317 = vmatprep.subr.mxu0 0.0
    %v318 = vand.u32 %v224, 4294901760
    %319 = vmatpush1.msra.mxu0 %v318
    %320 = vmatprep.subr.mxu0 0.0
    %v321 = vand.u32 %v225, 4294901760
    %322 = vmatpush1.msra.mxu0 %v321
    %323 = vmatprep.subr.mxu0 0.0
    %v324 = vand.u32 %v226, 4294901760
    %325 = vmatpush1.msra.mxu0 %v324
    %326 = vmatprep.subr.mxu0 0.0
    %v327 = vand.u32 %v227, 4294901760
    %328 = vmatpush1.msra.mxu0 %v327
    %329 = vmatprep.subr.mxu0 0.0
    %v330 = vand.u32 %v228, 4294901760
    %331 = vmatpush1.msra.mxu0 %v330
    %332 = vmatprep.subr.mxu0 0.0
    %v333 = vand.u32 %v229, 4294901760
    %334 = vmatpush1.msra.mxu0 %v333
    %335 = vmatprep.subr.mxu0 0.0
    %v336 = vand.u32 %v230, 4294901760
    %337 = vmatpush1.msra.mxu0 %v336
    %338 = vmatprep.subr.mxu0 0.0
    %v339 = vand.u32 %v231, 4294901760
    %340 = vmatpush1.msra.mxu0 %v339
    %v341 = vand.u32 %v30, 4294901760
    %v342 = vsub.f32 %v30, %v341
    %v343 = vand.u32 %v342, 4294901760
    %v344 = vsub.f32 %v342, %v343
    %v345 = vand.u32 %v344, 4294901760
    %346 = vmatprep.mubr.f32.mxu0 %v345
    %v347 = vand.u32 %v29, 4294901760
    %v348 = vsub.f32 %v29, %v347
    %v349 = vand.u32 %v348, 4294901760
    %v350 = vsub.f32 %v348, %v349
    %v351 = vand.u32 %v350, 4294901760
    %352 = vmatmul.mubr.f32.gmra.mrb[0].mxu0 %v351
    %v353 = vpop.f32.mrb[0].mxu0
    %v354 = vadd.f32 0.0, %v353
    %v355 = vpop.f32.mrb[0].mxu0
    %v356 = vand.u32 %v32, 4294901760
    %v357 = vsub.f32 %v32, %v356
    %v358 = vand.u32 %v357, 4294901760
    %v359 = vsub.f32 %v357, %v358
    %v360 = vand.u32 %v359, 4294901760
    %361 = vmatprep.mubr.f32.mxu0 %v360
    %v362 = vand.u32 %v31, 4294901760
    %v363 = vsub.f32 %v31, %v362
    %v364 = vand.u32 %v363, 4294901760
    %v365 = vsub.f32 %v363, %v364
    %v366 = vand.u32 %v365, 4294901760
    %367 = vmatmul.mubr.f32.gmra.mrb[0].mxu0 %v366
    %v368 = vpop.f32.mrb[0].mxu0
    %v369 = vadd.f32 0.0, %v368
    %v370 = vpop.f32.mrb[0].mxu0
    %371 = vdwg.mxu0
    %372 = vmatprep.subr.mxu0 0.0
    %v373 = vand.u32 %v200, 4294901760
    %v374 = vsub.f32 %v200, %v373
    %v375 = vand.u32 %v374, 4294901760
    %v376 = vsub.f32 %v374, %v375
    %v377 = vand.u32 %v376, 4294901760
    %378 = vmatpush1.msra.mxu0 %v377
    %379 = vmatprep.subr.mxu0 0.0
    %v380 = vand.u32 %v201, 4294901760
    %v381 = vsub.f32 %v201, %v380
    %v382 = vand.u32 %v381, 4294901760
    %v383 = vsub.f32 %v381, %v382
    %v384 = vand.u32 %v383, 4294901760
    %385 = vmatpush1.msra.mxu0 %v384
    %386 = vmatprep.subr.mxu0 0.0
    %v387 = vand.u32 %v202, 4294901760
    %v388 = vsub.f32 %v202, %v387
    %v389 = vand.u32 %v388, 4294901760
    %v390 = vsub.f32 %v388, %v389
    %v391 = vand.u32 %v390, 4294901760
    %392 = vmatpush1.msra.mxu0 %v391
    %393 = vmatprep.subr.mxu0 0.0
    %v394 = vand.u32 %v203, 4294901760
    %v395 = vsub.f32 %v203, %v394
    %v396 = vand.u32 %v395, 4294901760
    %v397 = vsub.f32 %v395, %v396
    %v398 = vand.u32 %v397, 4294901760
    %399 = vmatpush1.msra.mxu0 %v398
    %400 = vmatprep.subr.mxu0 0.0
    %v401 = vand.u32 %v204, 4294901760
    %v402 = vsub.f32 %v204, %v401
    %v403 = vand.u32 %v402, 4294901760
    %v404 = vsub.f32 %v402, %v403
    %v405 = vand.u32 %v404, 4294901760
    %406 = vmatpush1.msra.mxu0 %v405
    %407 = vmatprep.subr.mxu0 0.0
    %v408 = vand.u32 %v205, 4294901760
    %v409 = vsub.f32 %v205, %v408
    %v410 = vand.u32 %v409, 4294901760
    %v411 = vsub.f32 %v409, %v410
    %v412 = vand.u32 %v411, 4294901760
    %413 = vmatpush1.msra.mxu0 %v412
    %414 = vmatprep.subr.mxu0 0.0
    %v415 = vand.u32 %v206, 4294901760
    %v416 = vsub.f32 %v206, %v415
    %v417 = vand.u32 %v416, 4294901760
    %v418 = vsub.f32 %v416, %v417
    %v419 = vand.u32 %v418, 4294901760
    %420 = vmatpush1.msra.mxu0 %v419
    %421 = vmatprep.subr.mxu0 0.0
    %v422 = vand.u32 %v207, 4294901760
    %v423 = vsub.f32 %v207, %v422
    %v424 = vand.u32 %v423, 4294901760
    %v425 = vsub.f32 %v423, %v424
    %v426 = vand.u32 %v425, 4294901760
    %427 = vmatpush1.msra.mxu0 %v426
    %428 = vmatprep.subr.mxu0 0.0
    %v429 = vand.u32 %v208, 4294901760
    %v430 = vsub.f32 %v208, %v429
    %v431 = vand.u32 %v430, 4294901760
    %v432 = vsub.f32 %v430, %v431
    %v433 = vand.u32 %v432, 4294901760
    %434 = vmatpush1.msra.mxu0 %v433
    %435 = vmatprep.subr.mxu0 0.0
    %v436 = vand.u32 %v209, 4294901760
    %v437 = vsub.f32 %v209, %v436
    %v438 = vand.u32 %v437, 4294901760
    %v439 = vsub.f32 %v437, %v438
    %v440 = vand.u32 %v439, 4294901760
    %441 = vmatpush1.msra.mxu0 %v440
    %442 = vmatprep.subr.mxu0 0.0
    %v443 = vand.u32 %v210, 4294901760
    %v444 = vsub.f32 %v210, %v443
    %v445 = vand.u32 %v444, 4294901760
    %v446 = vsub.f32 %v444, %v445
    %v447 = vand.u32 %v446, 4294901760
    %448 = vmatpush1.msra.mxu0 %v447
    %449 = vmatprep.subr.mxu0 0.0
    %v450 = vand.u32 %v211, 4294901760
    %v451 = vsub.f32 %v211, %v450
    %v452 = vand.u32 %v451, 4294901760
    %v453 = vsub.f32 %v451, %v452
    %v454 = vand.u32 %v453, 4294901760
    %455 = vmatpush1.msra.mxu0 %v454
    %456 = vmatprep.subr.mxu0 0.0
    %v457 = vand.u32 %v212, 4294901760
    %v458 = vsub.f32 %v212, %v457
    %v459 = vand.u32 %v458, 4294901760
    %v460 = vsub.f32 %v458, %v459
    %v461 = vand.u32 %v460, 4294901760
    %462 = vmatpush1.msra.mxu0 %v461
    %463 = vmatprep.subr.mxu0 0.0
    %v464 = vand.u32 %v213, 4294901760
    %v465 = vsub.f32 %v213, %v464
    %v466 = vand.u32 %v465, 4294901760
    %v467 = vsub.f32 %v465, %v466
    %v468 = vand.u32 %v467, 4294901760
    %469 = vmatpush1.msra.mxu0 %v468
    %470 = vmatprep.subr.mxu0 0.0
    %v471 = vand.u32 %v214, 4294901760
    %v472 = vsub.f32 %v214, %v471
    %v473 = vand.u32 %v472, 4294901760
    %v474 = vsub.f32 %v472, %v473
    %v475 = vand.u32 %v474, 4294901760
    %476 = vmatpush1.msra.mxu0 %v475
    %477 = vmatprep.subr.mxu0 0.0
    %v478 = vand.u32 %v215, 4294901760
    %v479 = vsub.f32 %v215, %v478
    %v480 = vand.u32 %v479, 4294901760
    %v481 = vsub.f32 %v479, %v480
    %v482 = vand.u32 %v481, 4294901760
    %483 = vmatpush1.msra.mxu0 %v482
    %484 = vmatprep.subr.mxu0 0.0
    %v485 = vand.u32 %v216, 4294901760
    %v486 = vsub.f32 %v216, %v485
    %v487 = vand.u32 %v486, 4294901760
    %v488 = vsub.f32 %v486, %v487
    %v489 = vand.u32 %v488, 4294901760
    %490 = vmatpush1.msra.mxu0 %v489
    %491 = vmatprep.subr.mxu0 0.0
    %v492 = vand.u32 %v217, 4294901760
    %v493 = vsub.f32 %v217, %v492
    %v494 = vand.u32 %v493, 4294901760
    %v495 = vsub.f32 %v493, %v494
    %v496 = vand.u32 %v495, 4294901760
    %497 = vmatpush1.msra.mxu0 %v496
    %498 = vmatprep.subr.mxu0 0.0
    %v499 = vand.u32 %v218, 4294901760
    %v500 = vsub.f32 %v218, %v499
    %v501 = vand.u32 %v500, 4294901760
    %v502 = vsub.f32 %v500, %v501
    %v503 = vand.u32 %v502, 4294901760
    %504 = vmatpush1.msra.mxu0 %v503
    %505 = vmatprep.subr.mxu0 0.0
    %v506 = vand.u32 %v219, 4294901760
    %v507 = vsub.f32 %v219, %v506
    %v508 = vand.u32 %v507, 4294901760
    %v509 = vsub.f32 %v507, %v508
    %v510 = vand.u32 %v509, 4294901760
    %511 = vmatpush1.msra.mxu0 %v510
    %512 = vmatprep.subr.mxu0 0.0
    %v513 = vand.u32 %v220, 4294901760
    %v514 = vsub.f32 %v220, %v513
    %v515 = vand.u32 %v514, 4294901760
    %v516 = vsub.f32 %v514, %v515
    %v517 = vand.u32 %v516, 4294901760
    %518 = vmatpush1.msra.mxu0 %v517
    %519 = vmatprep.subr.mxu0 0.0
    %v520 = vand.u32 %v221, 4294901760
    %v521 = vsub.f32 %v221, %v520
    %v522 = vand.u32 %v521, 4294901760
    %v523 = vsub.f32 %v521, %v522
    %v524 = vand.u32 %v523, 4294901760
    %525 = vmatpush1.msra.mxu0 %v524
    %526 = vmatprep.subr.mxu0 0.0
    %v527 = vand.u32 %v222, 4294901760
    %v528 = vsub.f32 %v222, %v527
    %v529 = vand.u32 %v528, 4294901760
    %v530 = vsub.f32 %v528, %v529
    %v531 = vand.u32 %v530, 4294901760
    %532 = vmatpush1.msra.mxu0 %v531
    %533 = vmatprep.subr.mxu0 0.0
    %v534 = vand.u32 %v223, 4294901760
    %v535 = vsub.f32 %v223, %v534
    %v536 = vand.u32 %v535, 4294901760
    %v537 = vsub.f32 %v535, %v536
    %v538 = vand.u32 %v537, 4294901760
    %539 = vmatpush1.msra.mxu0 %v538
    %540 = vmatprep.subr.mxu0 0.0
    %v541 = vand.u32 %v224, 4294901760
    %v542 = vsub.f32 %v224, %v541
    %v543 = vand.u32 %v542, 4294901760
    %v544 = vsub.f32 %v542, %v543
    %v545 = vand.u32 %v544, 4294901760
    %546 = vmatpush1.msra.mxu0 %v545
    %547 = vmatprep.subr.mxu0 0.0
    %v548 = vand.u32 %v225, 4294901760
    %v549 = vsub.f32 %v225, %v548
    %v550 = vand.u32 %v549, 4294901760
    %v551 = vsub.f32 %v549, %v550
    %v552 = vand.u32 %v551, 4294901760
    %553 = vmatpush1.msra.mxu0 %v552
    %554 = vmatprep.subr.mxu0 0.0
    %v555 = vand.u32 %v226, 4294901760
    %v556 = vsub.f32 %v226, %v555
    %v557 = vand.u32 %v556, 4294901760
    %v558 = vsub.f32 %v556, %v557
    %v559 = vand.u32 %v558, 4294901760
    %560 = vmatpush1.msra.mxu0 %v559
    %561 = vmatprep.subr.mxu0 0.0
    %v562 = vand.u32 %v227, 4294901760
    %v563 = vsub.f32 %v227, %v562
    %v564 = vand.u32 %v563, 4294901760
    %v565 = vsub.f32 %v563, %v564
    %v566 = vand.u32 %v565, 4294901760
    %567 = vmatpush1.msra.mxu0 %v566
    %568 = vmatprep.subr.mxu0 0.0
    %v569 = vand.u32 %v228, 4294901760
    %v570 = vsub.f32 %v228, %v569
    %v571 = vand.u32 %v570, 4294901760
    %v572 = vsub.f32 %v570, %v571
    %v573 = vand.u32 %v572, 4294901760
    %574 = vmatpush1.msra.mxu0 %v573
    %575 = vmatprep.subr.mxu0 0.0
    %v576 = vand.u32 %v229, 4294901760
    %v577 = vsub.f32 %v229, %v576
    %v578 = vand.u32 %v577, 4294901760
    %v579 = vsub.f32 %v577, %v578
    %v580 = vand.u32 %v579, 4294901760
    %581 = vmatpush1.msra.mxu0 %v580
    %582 = vmatprep.subr.mxu0 0.0
    %v583 = vand.u32 %v230, 4294901760
    %v584 = vsub.f32 %v230, %v583
    %v585 = vand.u32 %v584, 4294901760
    %v586 = vsub.f32 %v584, %v585
    %v587 = vand.u32 %v586, 4294901760
    %588 = vmatpush1.msra.mxu0 %v587
    %589 = vmatprep.subr.mxu0 0.0
    %v590 = vand.u32 %v231, 4294901760
    %v591 = vsub.f32 %v231, %v590
    %v592 = vand.u32 %v591, 4294901760
    %v593 = vsub.f32 %v591, %v592
    %v594 = vand.u32 %v593, 4294901760
    %595 = vmatpush1.msra.mxu0 %v594
    %v596 = vand.u32 %v30, 4294901760
    %597 = vmatprep.mubr.f32.mxu0 %v596
    %v598 = vand.u32 %v29, 4294901760
    %599 = vmatmul.mubr.f32.gmra.mrb[0].mxu0 %v598
    %v600 = vpop.f32.mrb[0].mxu0
    %v601 = vadd.f32 %v354, %v600
    %v602 = vpop.f32.mrb[0].mxu0
    %v603 = vand.u32 %v32, 4294901760
    %604 = vmatprep.mubr.f32.mxu0 %v603
    %v605 = vand.u32 %v31, 4294901760
    %606 = vmatmul.mubr.f32.gmra.mrb[0].mxu0 %v605
    %v607 = vpop.f32.mrb[0].mxu0
    %v608 = vadd.f32 %v369, %v607
    %v609 = vpop.f32.mrb[0].mxu0
    %610 = vdwg.mxu0
    %611 = vmatprep.subr.mxu0 0.0
    %v612 = vand.u32 %v200, 4294901760
    %v613 = vsub.f32 %v200, %v612
    %614 = vmatpush1.msra.mxu0 %v613
    %615 = vmatprep.subr.mxu0 0.0
    %v616 = vand.u32 %v201, 4294901760
    %v617 = vsub.f32 %v201, %v616
    %618 = vmatpush1.msra.mxu0 %v617
    %619 = vmatprep.subr.mxu0 0.0
    %v620 = vand.u32 %v202, 4294901760
    %v621 = vsub.f32 %v202, %v620
    %622 = vmatpush1.msra.mxu0 %v621
    %623 = vmatprep.subr.mxu0 0.0
    %v624 = vand.u32 %v203, 4294901760
    %v625 = vsub.f32 %v203, %v624
    %626 = vmatpush1.msra.mxu0 %v625
    %627 = vmatprep.subr.mxu0 0.0
    %v628 = vand.u32 %v204, 4294901760
    %v629 = vsub.f32 %v204, %v628
    %630 = vmatpush1.msra.mxu0 %v629
    %631 = vmatprep.subr.mxu0 0.0
    %v632 = vand.u32 %v205, 4294901760
    %v633 = vsub.f32 %v205, %v632
    %634 = vmatpush1.msra.mxu0 %v633
    %635 = vmatprep.subr.mxu0 0.0
    %v636 = vand.u32 %v206, 4294901760
    %v637 = vsub.f32 %v206, %v636
    %638 = vmatpush1.msra.mxu0 %v637
    %639 = vmatprep.subr.mxu0 0.0
    %v640 = vand.u32 %v207, 4294901760
    %v641 = vsub.f32 %v207, %v640
    %642 = vmatpush1.msra.mxu0 %v641
    %643 = vmatprep.subr.mxu0 0.0
    %v644 = vand.u32 %v208, 4294901760
    %v645 = vsub.f32 %v208, %v644
    %646 = vmatpush1.msra.mxu0 %v645
    %647 = vmatprep.subr.mxu0 0.0
    %v648 = vand.u32 %v209, 4294901760
    %v649 = vsub.f32 %v209, %v648
    %650 = vmatpush1.msra.mxu0 %v649
    %651 = vmatprep.subr.mxu0 0.0
    %v652 = vand.u32 %v210, 4294901760
    %v653 = vsub.f32 %v210, %v652
    %654 = vmatpush1.msra.mxu0 %v653
    %655 = vmatprep.subr.mxu0 0.0
    %v656 = vand.u32 %v211, 4294901760
    %v657 = vsub.f32 %v211, %v656
    %658 = vmatpush1.msra.mxu0 %v657
    %659 = vmatprep.subr.mxu0 0.0
    %v660 = vand.u32 %v212, 4294901760
    %v661 = vsub.f32 %v212, %v660
    %662 = vmatpush1.msra.mxu0 %v661
    %663 = vmatprep.subr.mxu0 0.0
    %v664 = vand.u32 %v213, 4294901760
    %v665 = vsub.f32 %v213, %v664
    %666 = vmatpush1.msra.mxu0 %v665
    %667 = vmatprep.subr.mxu0 0.0
    %v668 = vand.u32 %v214, 4294901760
    %v669 = vsub.f32 %v214, %v668
    %670 = vmatpush1.msra.mxu0 %v669
    %671 = vmatprep.subr.mxu0 0.0
    %v672 = vand.u32 %v215, 4294901760
    %v673 = vsub.f32 %v215, %v672
    %674 = vmatpush1.msra.mxu0 %v673
    %675 = vmatprep.subr.mxu0 0.0
    %v676 = vand.u32 %v216, 4294901760
    %v677 = vsub.f32 %v216, %v676
    %678 = vmatpush1.msra.mxu0 %v677
    %679 = vmatprep.subr.mxu0 0.0
    %v680 = vand.u32 %v217, 4294901760
    %v681 = vsub.f32 %v217, %v680
    %682 = vmatpush1.msra.mxu0 %v681
    %683 = vmatprep.subr.mxu0 0.0
    %v684 = vand.u32 %v218, 4294901760
    %v685 = vsub.f32 %v218, %v684
    %686 = vmatpush1.msra.mxu0 %v685
    %687 = vmatprep.subr.mxu0 0.0
    %v688 = vand.u32 %v219, 4294901760
    %v689 = vsub.f32 %v219, %v688
    %690 = vmatpush1.msra.mxu0 %v689
    %691 = vmatprep.subr.mxu0 0.0
    %v692 = vand.u32 %v220, 4294901760
    %v693 = vsub.f32 %v220, %v692
    %694 = vmatpush1.msra.mxu0 %v693
    %695 = vmatprep.subr.mxu0 0.0
    %v696 = vand.u32 %v221, 4294901760
    %v697 = vsub.f32 %v221, %v696
    %698 = vmatpush1.msra.mxu0 %v697
    %699 = vmatprep.subr.mxu0 0.0
    %v700 = vand.u32 %v222, 4294901760
    %v701 = vsub.f32 %v222, %v700
    %702 = vmatpush1.msra.mxu0 %v701
    %703 = vmatprep.subr.mxu0 0.0
    %v704 = vand.u32 %v223, 4294901760
    %v705 = vsub.f32 %v223, %v704
    %706 = vmatpush1.msra.mxu0 %v705
    %707 = vmatprep.subr.mxu0 0.0
    %v708 = vand.u32 %v224, 4294901760
    %v709 = vsub.f32 %v224, %v708
    %710 = vmatpush1.msra.mxu0 %v709
    %711 = vmatprep.subr.mxu0 0.0
    %v712 = vand.u32 %v225, 4294901760
    %v713 = vsub.f32 %v225, %v712
    %714 = vmatpush1.msra.mxu0 %v713
    %715 = vmatprep.subr.mxu0 0.0
    %v716 = vand.u32 %v226, 4294901760
    %v717 = vsub.f32 %v226, %v716
    %718 = vmatpush1.msra.mxu0 %v717
    %719 = vmatprep.subr.mxu0 0.0
    %v720 = vand.u32 %v227, 4294901760
    %v721 = vsub.f32 %v227, %v720
    %722 = vmatpush1.msra.mxu0 %v721
    %723 = vmatprep.subr.mxu0 0.0
    %v724 = vand.u32 %v228, 4294901760
    %v725 = vsub.f32 %v228, %v724
    %726 = vmatpush1.msra.mxu0 %v725
    %727 = vmatprep.subr.mxu0 0.0
    %v728 = vand.u32 %v229, 4294901760
    %v729 = vsub.f32 %v229, %v728
    %730 = vmatpush1.msra.mxu0 %v729
    %731 = vmatprep.subr.mxu0 0.0
    %v732 = vand.u32 %v230, 4294901760
    %v733 = vsub.f32 %v230, %v732
    %734 = vmatpush1.msra.mxu0 %v733
    %735 = vmatprep.subr.mxu0 0.0
    %v736 = vand.u32 %v231, 4294901760
    %v737 = vsub.f32 %v231, %v736
    %738 = vmatpush1.msra.mxu0 %v737
    %v739 = vand.u32 %v30, 4294901760
    %v740 = vsub.f32 %v30, %v739
    %741 = vmatprep.mubr.f32.mxu0 %v740
    %v742 = vand.u32 %v29, 4294901760
    %v743 = vsub.f32 %v29, %v742
    %744 = vmatmul.mubr.f32.gmra.mrb[0].mxu0 %v743
    %v745 = vpop.f32.mrb[0].mxu0
    %v746 = vadd.f32 %v601, %v745
    %v747 = vpop.f32.mrb[0].mxu0
    %v748 = vand.u32 %v32, 4294901760
    %v749 = vsub.f32 %v32, %v748
    %750 = vmatprep.mubr.f32.mxu0 %v749
    %v751 = vand.u32 %v31, 4294901760
    %v752 = vsub.f32 %v31, %v751
    %753 = vmatmul.mubr.f32.gmra.mrb[0].mxu0 %v752
    %v754 = vpop.f32.mrb[0].mxu0
    %v755 = vadd.f32 %v608, %v754
    %v756 = vpop.f32.mrb[0].mxu0
    %757 = vdwg.mxu0
    %758 = vmatprep.subr.mxu0 0.0
    %v759 = vand.u32 %v200, 4294901760
    %760 = vmatpush1.msra.mxu0 %v759
    %761 = vmatprep.subr.mxu0 0.0
    %v762 = vand.u32 %v201, 4294901760
    %763 = vmatpush1.msra.mxu0 %v762
    %764 = vmatprep.subr.mxu0 0.0
    %v765 = vand.u32 %v202, 4294901760
    %766 = vmatpush1.msra.mxu0 %v765
    %767 = vmatprep.subr.mxu0 0.0
    %v768 = vand.u32 %v203, 4294901760
    %769 = vmatpush1.msra.mxu0 %v768
    %770 = vmatprep.subr.mxu0 0.0
    %v771 = vand.u32 %v204, 4294901760
    %772 = vmatpush1.msra.mxu0 %v771
    %773 = vmatprep.subr.mxu0 0.0
    %v774 = vand.u32 %v205, 4294901760
    %775 = vmatpush1.msra.mxu0 %v774
    %776 = vmatprep.subr.mxu0 0.0
    %v777 = vand.u32 %v206, 4294901760
    %778 = vmatpush1.msra.mxu0 %v777
    %779 = vmatprep.subr.mxu0 0.0
    %v780 = vand.u32 %v207, 4294901760
    %781 = vmatpush1.msra.mxu0 %v780
    %782 = vmatprep.subr.mxu0 0.0
    %v783 = vand.u32 %v208, 4294901760
    %784 = vmatpush1.msra.mxu0 %v783
    %785 = vmatprep.subr.mxu0 0.0
    %v786 = vand.u32 %v209, 4294901760
    %787 = vmatpush1.msra.mxu0 %v786
    %788 = vmatprep.subr.mxu0 0.0
    %v789 = vand.u32 %v210, 4294901760
    %790 = vmatpush1.msra.mxu0 %v789
    %791 = vmatprep.subr.mxu0 0.0
    %v792 = vand.u32 %v211, 4294901760
    %793 = vmatpush1.msra.mxu0 %v792
    %794 = vmatprep.subr.mxu0 0.0
    %v795 = vand.u32 %v212, 4294901760
    %796 = vmatpush1.msra.mxu0 %v795
    %797 = vmatprep.subr.mxu0 0.0
    %v798 = vand.u32 %v213, 4294901760
    %799 = vmatpush1.msra.mxu0 %v798
    %800 = vmatprep.subr.mxu0 0.0
    %v801 = vand.u32 %v214, 4294901760
    %802 = vmatpush1.msra.mxu0 %v801
    %803 = vmatprep.subr.mxu0 0.0
    %v804 = vand.u32 %v215, 4294901760
    %805 = vmatpush1.msra.mxu0 %v804
    %806 = vmatprep.subr.mxu0 0.0
    %v807 = vand.u32 %v216, 4294901760
    %808 = vmatpush1.msra.mxu0 %v807
    %809 = vmatprep.subr.mxu0 0.0
    %v810 = vand.u32 %v217, 4294901760
    %811 = vmatpush1.msra.mxu0 %v810
    %812 = vmatprep.subr.mxu0 0.0
    %v813 = vand.u32 %v218, 4294901760
    %814 = vmatpush1.msra.mxu0 %v813
    %815 = vmatprep.subr.mxu0 0.0
    %v816 = vand.u32 %v219, 4294901760
    %817 = vmatpush1.msra.mxu0 %v816
    %818 = vmatprep.subr.mxu0 0.0
    %v819 = vand.u32 %v220, 4294901760
    %820 = vmatpush1.msra.mxu0 %v819
    %821 = vmatprep.subr.mxu0 0.0
    %v822 = vand.u32 %v221, 4294901760
    %823 = vmatpush1.msra.mxu0 %v822
    %824 = vmatprep.subr.mxu0 0.0
    %v825 = vand.u32 %v222, 4294901760
    %826 = vmatpush1.msra.mxu0 %v825
    %827 = vmatprep.subr.mxu0 0.0
    %v828 = vand.u32 %v223, 4294901760
    %829 = vmatpush1.msra.mxu0 %v828
    %830 = vmatprep.subr.mxu0 0.0
    %v831 = vand.u32 %v224, 4294901760
    %832 = vmatpush1.msra.mxu0 %v831
    %833 = vmatprep.subr.mxu0 0.0
    %v834 = vand.u32 %v225, 4294901760
    %835 = vmatpush1.msra.mxu0 %v834
    %836 = vmatprep.subr.mxu0 0.0
    %v837 = vand.u32 %v226, 4294901760
    %838 = vmatpush1.msra.mxu0 %v837
    %839 = vmatprep.subr.mxu0 0.0
    %v840 = vand.u32 %v227, 4294901760
    %841 = vmatpush1.msra.mxu0 %v840
    %842 = vmatprep.subr.mxu0 0.0
    %v843 = vand.u32 %v228, 4294901760
    %844 = vmatpush1.msra.mxu0 %v843
    %845 = vmatprep.subr.mxu0 0.0
    %v846 = vand.u32 %v229, 4294901760
    %847 = vmatpush1.msra.mxu0 %v846
    %848 = vmatprep.subr.mxu0 0.0
    %v849 = vand.u32 %v230, 4294901760
    %850 = vmatpush1.msra.mxu0 %v849
    %851 = vmatprep.subr.mxu0 0.0
    %v852 = vand.u32 %v231, 4294901760
    %853 = vmatpush1.msra.mxu0 %v852
    %v854 = vand.u32 %v30, 4294901760
    %v855 = vsub.f32 %v30, %v854
    %v856 = vand.u32 %v855, 4294901760
    %857 = vmatprep.mubr.f32.mxu0 %v856
    %v858 = vand.u32 %v29, 4294901760
    %v859 = vsub.f32 %v29, %v858
    %v860 = vand.u32 %v859, 4294901760
    %861 = vmatmul.mubr.f32.gmra.mrb[0].mxu0 %v860
    %v862 = vpop.f32.mrb[0].mxu0
    %v863 = vadd.f32 %v746, %v862
    %v864 = vpop.f32.mrb[0].mxu0
    %v865 = vand.u32 %v32, 4294901760
    %v866 = vsub.f32 %v32, %v865
    %v867 = vand.u32 %v866, 4294901760
    %868 = vmatprep.mubr.f32.mxu0 %v867
    %v869 = vand.u32 %v31, 4294901760
    %v870 = vsub.f32 %v31, %v869
    %v871 = vand.u32 %v870, 4294901760
    %872 = vmatmul.mubr.f32.gmra.mrb[0].mxu0 %v871
    %v873 = vpop.f32.mrb[0].mxu0
    %v874 = vadd.f32 %v755, %v873
    %v875 = vpop.f32.mrb[0].mxu0
    %876 = vdwg.mxu0
    %877 = vmatprep.subr.mxu0 0.0
    %v878 = vand.u32 %v200, 4294901760
    %v879 = vsub.f32 %v200, %v878
    %v880 = vand.u32 %v879, 4294901760
    %881 = vmatpush1.msra.mxu0 %v880
    %882 = vmatprep.subr.mxu0 0.0
    %v883 = vand.u32 %v201, 4294901760
    %v884 = vsub.f32 %v201, %v883
    %v885 = vand.u32 %v884, 4294901760
    %886 = vmatpush1.msra.mxu0 %v885
    %887 = vmatprep.subr.mxu0 0.0
    %v888 = vand.u32 %v202, 4294901760
    %v889 = vsub.f32 %v202, %v888
    %v890 = vand.u32 %v889, 4294901760
    %891 = vmatpush1.msra.mxu0 %v890
    %892 = vmatprep.subr.mxu0 0.0
    %v893 = vand.u32 %v203, 4294901760
    %v894 = vsub.f32 %v203, %v893
    %v895 = vand.u32 %v894, 4294901760
    %896 = vmatpush1.msra.mxu0 %v895
    %897 = vmatprep.subr.mxu0 0.0
    %v898 = vand.u32 %v204, 4294901760
    %v899 = vsub.f32 %v204, %v898
    %v900 = vand.u32 %v899, 4294901760
    %901 = vmatpush1.msra.mxu0 %v900
    %902 = vmatprep.subr.mxu0 0.0
    %v903 = vand.u32 %v205, 4294901760
    %v904 = vsub.f32 %v205, %v903
    %v905 = vand.u32 %v904, 4294901760
    %906 = vmatpush1.msra.mxu0 %v905
    %907 = vmatprep.subr.mxu0 0.0
    %v908 = vand.u32 %v206, 4294901760
    %v909 = vsub.f32 %v206, %v908
    %v910 = vand.u32 %v909, 4294901760
    %911 = vmatpush1.msra.mxu0 %v910
    %912 = vmatprep.subr.mxu0 0.0
    %v913 = vand.u32 %v207, 4294901760
    %v914 = vsub.f32 %v207, %v913
    %v915 = vand.u32 %v914, 4294901760
    %916 = vmatpush1.msra.mxu0 %v915
    %917 = vmatprep.subr.mxu0 0.0
    %v918 = vand.u32 %v208, 4294901760
    %v919 = vsub.f32 %v208, %v918
    %v920 = vand.u32 %v919, 4294901760
    %921 = vmatpush1.msra.mxu0 %v920
    %922 = vmatprep.subr.mxu0 0.0
    %v923 = vand.u32 %v209, 4294901760
    %v924 = vsub.f32 %v209, %v923
    %v925 = vand.u32 %v924, 4294901760
    %926 = vmatpush1.msra.mxu0 %v925
    %927 = vmatprep.subr.mxu0 0.0
    %v928 = vand.u32 %v210, 4294901760
    %v929 = vsub.f32 %v210, %v928
    %v930 = vand.u32 %v929, 4294901760
    %931 = vmatpush1.msra.mxu0 %v930
    %932 = vmatprep.subr.mxu0 0.0
    %v933 = vand.u32 %v211, 4294901760
    %v934 = vsub.f32 %v211, %v933
    %v935 = vand.u32 %v934, 4294901760
    %936 = vmatpush1.msra.mxu0 %v935
    %937 = vmatprep.subr.mxu0 0.0
    %v938 = vand.u32 %v212, 4294901760
    %v939 = vsub.f32 %v212, %v938
    %v940 = vand.u32 %v939, 4294901760
    %941 = vmatpush1.msra.mxu0 %v940
    %942 = vmatprep.subr.mxu0 0.0
    %v943 = vand.u32 %v213, 4294901760
    %v944 = vsub.f32 %v213, %v943
    %v945 = vand.u32 %v944, 4294901760
    %946 = vmatpush1.msra.mxu0 %v945
    %947 = vmatprep.subr.mxu0 0.0
    %v948 = vand.u32 %v214, 4294901760
    %v949 = vsub.f32 %v214, %v948
    %v950 = vand.u32 %v949, 4294901760
    %951 = vmatpush1.msra.mxu0 %v950
    %952 = vmatprep.subr.mxu0 0.0
    %v953 = vand.u32 %v215, 4294901760
    %v954 = vsub.f32 %v215, %v953
    %v955 = vand.u32 %v954, 4294901760
    %956 = vmatpush1.msra.mxu0 %v955
    %957 = vmatprep.subr.mxu0 0.0
    %v958 = vand.u32 %v216, 4294901760
    %v959 = vsub.f32 %v216, %v958
    %v960 = vand.u32 %v959, 4294901760
    %961 = vmatpush1.msra.mxu0 %v960
    %962 = vmatprep.subr.mxu0 0.0
    %v963 = vand.u32 %v217, 4294901760
    %v964 = vsub.f32 %v217, %v963
    %v965 = vand.u32 %v964, 4294901760
    %966 = vmatpush1.msra.mxu0 %v965
    %967 = vmatprep.subr.mxu0 0.0
    %v968 = vand.u32 %v218, 4294901760
    %v969 = vsub.f32 %v218, %v968
    %v970 = vand.u32 %v969, 4294901760
    %971 = vmatpush1.msra.mxu0 %v970
    %972 = vmatprep.subr.mxu0 0.0
    %v973 = vand.u32 %v219, 4294901760
    %v974 = vsub.f32 %v219, %v973
    %v975 = vand.u32 %v974, 4294901760
    %976 = vmatpush1.msra.mxu0 %v975
    %977 = vmatprep.subr.mxu0 0.0
    %v978 = vand.u32 %v220, 4294901760
    %v979 = vsub.f32 %v220, %v978
    %v980 = vand.u32 %v979, 4294901760
    %981 = vmatpush1.msra.mxu0 %v980
    %982 = vmatprep.subr.mxu0 0.0
    %v983 = vand.u32 %v221, 4294901760
    %v984 = vsub.f32 %v221, %v983
    %v985 = vand.u32 %v984, 4294901760
    %986 = vmatpush1.msra.mxu0 %v985
    %987 = vmatprep.subr.mxu0 0.0
    %v988 = vand.u32 %v222, 4294901760
    %v989 = vsub.f32 %v222, %v988
    %v990 = vand.u32 %v989, 4294901760
    %991 = vmatpush1.msra.mxu0 %v990
    %992 = vmatprep.subr.mxu0 0.0
    %v993 = vand.u32 %v223, 4294901760
    %v994 = vsub.f32 %v223, %v993
    %v995 = vand.u32 %v994, 4294901760
    %996 = vmatpush1.msra.mxu0 %v995
    %997 = vmatprep.subr.mxu0 0.0
    %v998 = vand.u32 %v224, 4294901760
    %v999 = vsub.f32 %v224, %v998
    %v1000 = vand.u32 %v999, 4294901760
    %1001 = vmatpush1.msra.mxu0 %v1000
    %1002 = vmatprep.subr.mxu0 0.0
    %v1003 = vand.u32 %v225, 4294901760
    %v1004 = vsub.f32 %v225, %v1003
    %v1005 = vand.u32 %v1004, 4294901760
    %1006 = vmatpush1.msra.mxu0 %v1005
    %1007 = vmatprep.subr.mxu0 0.0
    %v1008 = vand.u32 %v226, 4294901760
    %v1009 = vsub.f32 %v226, %v1008
    %v1010 = vand.u32 %v1009, 4294901760
    %1011 = vmatpush1.msra.mxu0 %v1010
    %1012 = vmatprep.subr.mxu0 0.0
    %v1013 = vand.u32 %v227, 4294901760
    %v1014 = vsub.f32 %v227, %v1013
    %v1015 = vand.u32 %v1014, 4294901760
    %1016 = vmatpush1.msra.mxu0 %v1015
    %1017 = vmatprep.subr.mxu0 0.0
    %v1018 = vand.u32 %v228, 4294901760
    %v1019 = vsub.f32 %v228, %v1018
    %v1020 = vand.u32 %v1019, 4294901760
    %1021 = vmatpush1.msra.mxu0 %v1020
    %1022 = vmatprep.subr.mxu0 0.0
    %v1023 = vand.u32 %v229, 4294901760
    %v1024 = vsub.f32 %v229, %v1023
    %v1025 = vand.u32 %v1024, 4294901760
    %1026 = vmatpush1.msra.mxu0 %v1025
    %1027 = vmatprep.subr.mxu0 0.0
    %v1028 = vand.u32 %v230, 4294901760
    %v1029 = vsub.f32 %v230, %v1028
    %v1030 = vand.u32 %v1029, 4294901760
    %1031 = vmatpush1.msra.mxu0 %v1030
    %1032 = vmatprep.subr.mxu0 0.0
    %v1033 = vand.u32 %v231, 4294901760
    %v1034 = vsub.f32 %v231, %v1033
    %v1035 = vand.u32 %v1034, 4294901760
    %1036 = vmatpush1.msra.mxu0 %v1035
    %v1037 = vand.u32 %v30, 4294901760
    %1038 = vmatprep.mubr.f32.mxu0 %v1037
    %v1039 = vand.u32 %v29, 4294901760
    %1040 = vmatmul.mubr.f32.gmra.mrb[0].mxu0 %v1039
    %v1041 = vpop.f32.mrb[0].mxu0
    %v1042 = vadd.f32 %v863, %v1041
    %v1043 = vpop.f32.mrb[0].mxu0
    %v1044 = vand.u32 %v32, 4294901760
    %1045 = vmatprep.mubr.f32.mxu0 %v1044
    %v1046 = vand.u32 %v31, 4294901760
    %1047 = vmatmul.mubr.f32.gmra.mrb[0].mxu0 %v1046
    %v1048 = vpop.f32.mrb[0].mxu0
    %v1049 = vadd.f32 %v874, %v1048
    %v1050 = vpop.f32.mrb[0].mxu0
    %1051 = vdwg.mxu0
    %1052 = vmatprep.subr.mxu0 0.0
    %v1053 = vand.u32 %v200, 4294901760
    %1054 = vmatpush1.msra.mxu0 %v1053
    %1055 = vmatprep.subr.mxu0 0.0
    %v1056 = vand.u32 %v201, 4294901760
    %1057 = vmatpush1.msra.mxu0 %v1056
    %1058 = vmatprep.subr.mxu0 0.0
    %v1059 = vand.u32 %v202, 4294901760
    %1060 = vmatpush1.msra.mxu0 %v1059
    %1061 = vmatprep.subr.mxu0 0.0
    %v1062 = vand.u32 %v203, 4294901760
    %1063 = vmatpush1.msra.mxu0 %v1062
    %1064 = vmatprep.subr.mxu0 0.0
    %v1065 = vand.u32 %v204, 4294901760
    %1066 = vmatpush1.msra.mxu0 %v1065
    %1067 = vmatprep.subr.mxu0 0.0
    %v1068 = vand.u32 %v205, 4294901760
    %1069 = vmatpush1.msra.mxu0 %v1068
    %1070 = vmatprep.subr.mxu0 0.0
    %v1071 = vand.u32 %v206, 4294901760
    %1072 = vmatpush1.msra.mxu0 %v1071
    %1073 = vmatprep.subr.mxu0 0.0
    %v1074 = vand.u32 %v207, 4294901760
    %1075 = vmatpush1.msra.mxu0 %v1074
    %1076 = vmatprep.subr.mxu0 0.0
    %v1077 = vand.u32 %v208, 4294901760
    %1078 = vmatpush1.msra.mxu0 %v1077
    %1079 = vmatprep.subr.mxu0 0.0
    %v1080 = vand.u32 %v209, 4294901760
    %1081 = vmatpush1.msra.mxu0 %v1080
    %1082 = vmatprep.subr.mxu0 0.0
    %v1083 = vand.u32 %v210, 4294901760
    %1084 = vmatpush1.msra.mxu0 %v1083
    %1085 = vmatprep.subr.mxu0 0.0
    %v1086 = vand.u32 %v211, 4294901760
    %1087 = vmatpush1.msra.mxu0 %v1086
    %1088 = vmatprep.subr.mxu0 0.0
    %v1089 = vand.u32 %v212, 4294901760
    %1090 = vmatpush1.msra.mxu0 %v1089
    %1091 = vmatprep.subr.mxu0 0.0
    %v1092 = vand.u32 %v213, 4294901760
    %1093 = vmatpush1.msra.mxu0 %v1092
    %1094 = vmatprep.subr.mxu0 0.0
    %v1095 = vand.u32 %v214, 4294901760
    %1096 = vmatpush1.msra.mxu0 %v1095
    %1097 = vmatprep.subr.mxu0 0.0
    %v1098 = vand.u32 %v215, 4294901760
    %1099 = vmatpush1.msra.mxu0 %v1098
    %1100 = vmatprep.subr.mxu0 0.0
    %v1101 = vand.u32 %v216, 4294901760
    %1102 = vmatpush1.msra.mxu0 %v1101
    %1103 = vmatprep.subr.mxu0 0.0
    %v1104 = vand.u32 %v217, 4294901760
    %1105 = vmatpush1.msra.mxu0 %v1104
    %1106 = vmatprep.subr.mxu0 0.0
    %v1107 = vand.u32 %v218, 4294901760
    %1108 = vmatpush1.msra.mxu0 %v1107
    %1109 = vmatprep.subr.mxu0 0.0
    %v1110 = vand.u32 %v219, 4294901760
    %1111 = vmatpush1.msra.mxu0 %v1110
    %1112 = vmatprep.subr.mxu0 0.0
    %v1113 = vand.u32 %v220, 4294901760
    %1114 = vmatpush1.msra.mxu0 %v1113
    %1115 = vmatprep.subr.mxu0 0.0
    %v1116 = vand.u32 %v221, 4294901760
    %1117 = vmatpush1.msra.mxu0 %v1116
    %1118 = vmatprep.subr.mxu0 0.0
    %v1119 = vand.u32 %v222, 4294901760
    %1120 = vmatpush1.msra.mxu0 %v1119
    %1121 = vmatprep.subr.mxu0 0.0
    %v1122 = vand.u32 %v223, 4294901760
    %1123 = vmatpush1.msra.mxu0 %v1122
    %1124 = vmatprep.subr.mxu0 0.0
    %v1125 = vand.u32 %v224, 4294901760
    %1126 = vmatpush1.msra.mxu0 %v1125
    %1127 = vmatprep.subr.mxu0 0.0
    %v1128 = vand.u32 %v225, 4294901760
    %1129 = vmatpush1.msra.mxu0 %v1128
    %1130 = vmatprep.subr.mxu0 0.0
    %v1131 = vand.u32 %v226, 4294901760
    %1132 = vmatpush1.msra.mxu0 %v1131
    %1133 = vmatprep.subr.mxu0 0.0
    %v1134 = vand.u32 %v227, 4294901760
    %1135 = vmatpush1.msra.mxu0 %v1134
    %1136 = vmatprep.subr.mxu0 0.0
    %v1137 = vand.u32 %v228, 4294901760
    %1138 = vmatpush1.msra.mxu0 %v1137
    %1139 = vmatprep.subr.mxu0 0.0
    %v1140 = vand.u32 %v229, 4294901760
    %1141 = vmatpush1.msra.mxu0 %v1140
    %1142 = vmatprep.subr.mxu0 0.0
    %v1143 = vand.u32 %v230, 4294901760
    %1144 = vmatpush1.msra.mxu0 %v1143
    %1145 = vmatprep.subr.mxu0 0.0
    %v1146 = vand.u32 %v231, 4294901760
    %1147 = vmatpush1.msra.mxu0 %v1146
    %v1148 = vand.u32 %v30, 4294901760
    %1149 = vmatprep.mubr.f32.mxu0 %v1148
    %v1150 = vand.u32 %v29, 4294901760
    %1151 = vmatmul.mubr.f32.gmra.mrb[0].mxu0 %v1150
    %v1152 = vpop.f32.mrb[0].mxu0
    %v1153 = vadd.f32 %v1042, %v1152
    %v1154 = vpop.f32.mrb[0].mxu0
    %v1155 = vand.u32 %v32, 4294901760
    %1156 = vmatprep.mubr.f32.mxu0 %v1155
    %v1157 = vand.u32 %v31, 4294901760
    %1158 = vmatmul.mubr.f32.gmra.mrb[0].mxu0 %v1157
    %v1159 = vpop.f32.mrb[0].mxu0
    %v1160 = vadd.f32 %v1049, %v1159
    %v1161 = vpop.f32.mrb[0].mxu0
    %1162 = vdwg.mxu0
    %v1163 = vmul.f32 %v1153, 0.03125
    %v1164 = vmul.f32 %v1160, 0.03125
    %vm1165 = vcmask 64512
    %v1167 = vsel %vm1165, %v1163, 0
    %v1170 = vsel %vm1165, %v1164, 0
    %v1172 = vand.u32 %v244, 4294901760
    %1173 = vmatprep.subr.mxu0 %v1172
    %v1174 = vand.u32 %v243, 4294901760
    %1175 = vmatpush1.msra.mxu0 %v1174
    %1176 = vmatprep.subr.mxu0 0.0
    %1177 = vmatpush1.msra.mxu0 0.0
    %1178 = vmatprep.subr.mxu0 0.0
    %1179 = vmatpush1.msra.mxu0 0.0
    %1180 = vmatprep.subr.mxu0 0.0
    %1181 = vmatpush1.msra.mxu0 0.0
    %1182 = vmatprep.subr.mxu0 0.0
    %1183 = vmatpush1.msra.mxu0 0.0
    %1184 = vmatprep.subr.mxu0 0.0
    %1185 = vmatpush1.msra.mxu0 0.0
    %1186 = vmatprep.subr.mxu0 0.0
    %1187 = vmatpush1.msra.mxu0 0.0
    %1188 = vmatprep.subr.mxu0 0.0
    %1189 = vmatpush1.msra.mxu0 0.0
    %1190 = vmatprep.subr.mxu0 0.0
    %1191 = vmatpush1.msra.mxu0 0.0
    %1192 = vmatprep.subr.mxu0 0.0
    %1193 = vmatpush1.msra.mxu0 0.0
    %1194 = vmatprep.subr.mxu0 0.0
    %1195 = vmatpush1.msra.mxu0 0.0
    %1196 = vmatprep.subr.mxu0 0.0
    %1197 = vmatpush1.msra.mxu0 0.0
    %1198 = vmatprep.subr.mxu0 0.0
    %1199 = vmatpush1.msra.mxu0 0.0
    %1200 = vmatprep.subr.mxu0 0.0
    %1201 = vmatpush1.msra.mxu0 0.0
    %1202 = vmatprep.subr.mxu0 0.0
    %1203 = vmatpush1.msra.mxu0 0.0
    %1204 = vmatprep.subr.mxu0 0.0
    %1205 = vmatpush1.msra.mxu0 0.0
    %1206 = vmatprep.subr.mxu0 0.0
    %1207 = vmatpush1.msra.mxu0 0.0
    %1208 = vmatprep.subr.mxu0 0.0
    %1209 = vmatpush1.msra.mxu0 0.0
    %1210 = vmatprep.subr.mxu0 0.0
    %1211 = vmatpush1.msra.mxu0 0.0
    %1212 = vmatprep.subr.mxu0 0.0
    %1213 = vmatpush1.msra.mxu0 0.0
    %1214 = vmatprep.subr.mxu0 0.0
    %1215 = vmatpush1.msra.mxu0 0.0
    %1216 = vmatprep.subr.mxu0 0.0
    %1217 = vmatpush1.msra.mxu0 0.0
    %1218 = vmatprep.subr.mxu0 0.0
    %1219 = vmatpush1.msra.mxu0 0.0
    %1220 = vmatprep.subr.mxu0 0.0
    %1221 = vmatpush1.msra.mxu0 0.0
    %1222 = vmatprep.subr.mxu0 0.0
    %1223 = vmatpush1.msra.mxu0 0.0
    %1224 = vmatprep.subr.mxu0 0.0
    %1225 = vmatpush1.msra.mxu0 0.0
    %1226 = vmatprep.subr.mxu0 0.0
    %1227 = vmatpush1.msra.mxu0 0.0
    %1228 = vmatprep.subr.mxu0 0.0
    %1229 = vmatpush1.msra.mxu0 0.0
    %1230 = vmatprep.subr.mxu0 0.0
    %1231 = vmatpush1.msra.mxu0 0.0
    %1232 = vmatprep.subr.mxu0 0.0
    %1233 = vmatpush1.msra.mxu0 0.0
    %1234 = vmatprep.subr.mxu0 0.0
    %1235 = vmatpush1.msra.mxu0 0.0
    %1236 = vmatprep.subr.mxu0 0.0
    %1237 = vmatpush1.msra.mxu0 0.0
    %1238 = vmatprep.mubr.f32.mxu0 0.0
    %v1239 = vand.u32 %v1167, 4294901760
    %v1240 = vsub.f32 %v1167, %v1239
    %v1241 = vand.u32 %v1240, 4294901760
    %v1242 = vsub.f32 %v1240, %v1241
    %v1243 = vand.u32 %v1242, 4294901760
    %1244 = vmatmul.mubr.f32.gmra.mrb[0].mxu0 %v1243
    %v1245 = vpop.f32.mrb[0].mxu0
    %v1246 = vadd.f32 0.0, %v1245
    %v1247 = vpop.f32.mrb[0].mxu0
    %v1248 = vadd.f32 0.0, %v1247
    %1249 = vmatprep.mubr.f32.mxu0 0.0
    %v1250 = vand.u32 %v1170, 4294901760
    %v1251 = vsub.f32 %v1170, %v1250
    %v1252 = vand.u32 %v1251, 4294901760
    %v1253 = vsub.f32 %v1251, %v1252
    %v1254 = vand.u32 %v1253, 4294901760
    %1255 = vmatmul.mubr.f32.gmra.mrb[0].mxu0 %v1254
    %v1256 = vpop.f32.mrb[0].mxu0
    %v1257 = vadd.f32 0.0, %v1256
    %v1258 = vpop.f32.mrb[0].mxu0
    %v1259 = vadd.f32 0.0, %v1258
    %1260 = vdwg.mxu0
    %v1261 = vand.u32 %v244, 4294901760
    %v1262 = vsub.f32 %v244, %v1261
    %v1263 = vand.u32 %v1262, 4294901760
    %v1264 = vsub.f32 %v1262, %v1263
    %v1265 = vand.u32 %v1264, 4294901760
    %1266 = vmatprep.subr.mxu0 %v1265
    %v1267 = vand.u32 %v243, 4294901760
    %v1268 = vsub.f32 %v243, %v1267
    %v1269 = vand.u32 %v1268, 4294901760
    %v1270 = vsub.f32 %v1268, %v1269
    %v1271 = vand.u32 %v1270, 4294901760
    %1272 = vmatpush1.msra.mxu0 %v1271
    %1273 = vmatprep.subr.mxu0 0.0
    %1274 = vmatpush1.msra.mxu0 0.0
    %1275 = vmatprep.subr.mxu0 0.0
    %1276 = vmatpush1.msra.mxu0 0.0
    %1277 = vmatprep.subr.mxu0 0.0
    %1278 = vmatpush1.msra.mxu0 0.0
    %1279 = vmatprep.subr.mxu0 0.0
    %1280 = vmatpush1.msra.mxu0 0.0
    %1281 = vmatprep.subr.mxu0 0.0
    %1282 = vmatpush1.msra.mxu0 0.0
    %1283 = vmatprep.subr.mxu0 0.0
    %1284 = vmatpush1.msra.mxu0 0.0
    %1285 = vmatprep.subr.mxu0 0.0
    %1286 = vmatpush1.msra.mxu0 0.0
    %1287 = vmatprep.subr.mxu0 0.0
    %1288 = vmatpush1.msra.mxu0 0.0
    %1289 = vmatprep.subr.mxu0 0.0
    %1290 = vmatpush1.msra.mxu0 0.0
    %1291 = vmatprep.subr.mxu0 0.0
    %1292 = vmatpush1.msra.mxu0 0.0
    %1293 = vmatprep.subr.mxu0 0.0
    %1294 = vmatpush1.msra.mxu0 0.0
    %1295 = vmatprep.subr.mxu0 0.0
    %1296 = vmatpush1.msra.mxu0 0.0
    %1297 = vmatprep.subr.mxu0 0.0
    %1298 = vmatpush1.msra.mxu0 0.0
    %1299 = vmatprep.subr.mxu0 0.0
    %1300 = vmatpush1.msra.mxu0 0.0
    %1301 = vmatprep.subr.mxu0 0.0
    %1302 = vmatpush1.msra.mxu0 0.0
    %1303 = vmatprep.subr.mxu0 0.0
    %1304 = vmatpush1.msra.mxu0 0.0
    %1305 = vmatprep.subr.mxu0 0.0
    %1306 = vmatpush1.msra.mxu0 0.0
    %1307 = vmatprep.subr.mxu0 0.0
    %1308 = vmatpush1.msra.mxu0 0.0
    %1309 = vmatprep.subr.mxu0 0.0
    %1310 = vmatpush1.msra.mxu0 0.0
    %1311 = vmatprep.subr.mxu0 0.0
    %1312 = vmatpush1.msra.mxu0 0.0
    %1313 = vmatprep.subr.mxu0 0.0
    %1314 = vmatpush1.msra.mxu0 0.0
    %1315 = vmatprep.subr.mxu0 0.0
    %1316 = vmatpush1.msra.mxu0 0.0
    %1317 = vmatprep.subr.mxu0 0.0
    %1318 = vmatpush1.msra.mxu0 0.0
    %1319 = vmatprep.subr.mxu0 0.0
    %1320 = vmatpush1.msra.mxu0 0.0
    %1321 = vmatprep.subr.mxu0 0.0
    %1322 = vmatpush1.msra.mxu0 0.0
    %1323 = vmatprep.subr.mxu0 0.0
    %1324 = vmatpush1.msra.mxu0 0.0
    %1325 = vmatprep.subr.mxu0 0.0
    %1326 = vmatpush1.msra.mxu0 0.0
    %1327 = vmatprep.subr.mxu0 0.0
    %1328 = vmatpush1.msra.mxu0 0.0
    %1329 = vmatprep.subr.mxu0 0.0
    %1330 = vmatpush1.msra.mxu0 0.0
    %1331 = vmatprep.subr.mxu0 0.0
    %1332 = vmatpush1.msra.mxu0 0.0
    %1333 = vmatprep.subr.mxu0 0.0
    %1334 = vmatpush1.msra.mxu0 0.0
    %1335 = vmatprep.mubr.f32.mxu0 0.0
    %v1336 = vand.u32 %v1167, 4294901760
    %1337 = vmatmul.mubr.f32.gmra.mrb[0].mxu0 %v1336
    %v1338 = vpop.f32.mrb[0].mxu0
    %v1339 = vadd.f32 %v1246, %v1338
    %v1340 = vpop.f32.mrb[0].mxu0
    %v1341 = vadd.f32 %v1248, %v1340
    %1342 = vmatprep.mubr.f32.mxu0 0.0
    %v1343 = vand.u32 %v1170, 4294901760
    %1344 = vmatmul.mubr.f32.gmra.mrb[0].mxu0 %v1343
    %v1345 = vpop.f32.mrb[0].mxu0
    %v1346 = vadd.f32 %v1257, %v1345
    %v1347 = vpop.f32.mrb[0].mxu0
    %v1348 = vadd.f32 %v1259, %v1347
    %1349 = vdwg.mxu0
    %v1350 = vand.u32 %v244, 4294901760
    %v1351 = vsub.f32 %v244, %v1350
    %1352 = vmatprep.subr.mxu0 %v1351
    %v1353 = vand.u32 %v243, 4294901760
    %v1354 = vsub.f32 %v243, %v1353
    %1355 = vmatpush1.msra.mxu0 %v1354
    %1356 = vmatprep.subr.mxu0 0.0
    %1357 = vmatpush1.msra.mxu0 0.0
    %1358 = vmatprep.subr.mxu0 0.0
    %1359 = vmatpush1.msra.mxu0 0.0
    %1360 = vmatprep.subr.mxu0 0.0
    %1361 = vmatpush1.msra.mxu0 0.0
    %1362 = vmatprep.subr.mxu0 0.0
    %1363 = vmatpush1.msra.mxu0 0.0
    %1364 = vmatprep.subr.mxu0 0.0
    %1365 = vmatpush1.msra.mxu0 0.0
    %1366 = vmatprep.subr.mxu0 0.0
    %1367 = vmatpush1.msra.mxu0 0.0
    %1368 = vmatprep.subr.mxu0 0.0
    %1369 = vmatpush1.msra.mxu0 0.0
    %1370 = vmatprep.subr.mxu0 0.0
    %1371 = vmatpush1.msra.mxu0 0.0
    %1372 = vmatprep.subr.mxu0 0.0
    %1373 = vmatpush1.msra.mxu0 0.0
    %1374 = vmatprep.subr.mxu0 0.0
    %1375 = vmatpush1.msra.mxu0 0.0
    %1376 = vmatprep.subr.mxu0 0.0
    %1377 = vmatpush1.msra.mxu0 0.0
    %1378 = vmatprep.subr.mxu0 0.0
    %1379 = vmatpush1.msra.mxu0 0.0
    %1380 = vmatprep.subr.mxu0 0.0
    %1381 = vmatpush1.msra.mxu0 0.0
    %1382 = vmatprep.subr.mxu0 0.0
    %1383 = vmatpush1.msra.mxu0 0.0
    %1384 = vmatprep.subr.mxu0 0.0
    %1385 = vmatpush1.msra.mxu0 0.0
    %1386 = vmatprep.subr.mxu0 0.0
    %1387 = vmatpush1.msra.mxu0 0.0
    %1388 = vmatprep.subr.mxu0 0.0
    %1389 = vmatpush1.msra.mxu0 0.0
    %1390 = vmatprep.subr.mxu0 0.0
    %1391 = vmatpush1.msra.mxu0 0.0
    %1392 = vmatprep.subr.mxu0 0.0
    %1393 = vmatpush1.msra.mxu0 0.0
    %1394 = vmatprep.subr.mxu0 0.0
    %1395 = vmatpush1.msra.mxu0 0.0
    %1396 = vmatprep.subr.mxu0 0.0
    %1397 = vmatpush1.msra.mxu0 0.0
    %1398 = vmatprep.subr.mxu0 0.0
    %1399 = vmatpush1.msra.mxu0 0.0
    %1400 = vmatprep.subr.mxu0 0.0
    %1401 = vmatpush1.msra.mxu0 0.0
    %1402 = vmatprep.subr.mxu0 0.0
    %1403 = vmatpush1.msra.mxu0 0.0
    %1404 = vmatprep.subr.mxu0 0.0
    %1405 = vmatpush1.msra.mxu0 0.0
    %1406 = vmatprep.subr.mxu0 0.0
    %1407 = vmatpush1.msra.mxu0 0.0
    %1408 = vmatprep.subr.mxu0 0.0
    %1409 = vmatpush1.msra.mxu0 0.0
    %1410 = vmatprep.subr.mxu0 0.0
    %1411 = vmatpush1.msra.mxu0 0.0
    %1412 = vmatprep.subr.mxu0 0.0
    %1413 = vmatpush1.msra.mxu0 0.0
    %1414 = vmatprep.subr.mxu0 0.0
    %1415 = vmatpush1.msra.mxu0 0.0
    %1416 = vmatprep.subr.mxu0 0.0
    %1417 = vmatpush1.msra.mxu0 0.0
    %1418 = vmatprep.mubr.f32.mxu0 0.0
    %v1419 = vand.u32 %v1167, 4294901760
    %v1420 = vsub.f32 %v1167, %v1419
    %1421 = vmatmul.mubr.f32.gmra.mrb[0].mxu0 %v1420
    %v1422 = vpop.f32.mrb[0].mxu0
    %v1423 = vadd.f32 %v1339, %v1422
    %v1424 = vpop.f32.mrb[0].mxu0
    %v1425 = vadd.f32 %v1341, %v1424
    %1426 = vmatprep.mubr.f32.mxu0 0.0
    %v1427 = vand.u32 %v1170, 4294901760
    %v1428 = vsub.f32 %v1170, %v1427
    %1429 = vmatmul.mubr.f32.gmra.mrb[0].mxu0 %v1428
    %v1430 = vpop.f32.mrb[0].mxu0
    %v1431 = vadd.f32 %v1346, %v1430
    %v1432 = vpop.f32.mrb[0].mxu0
    %v1433 = vadd.f32 %v1348, %v1432
    %1434 = vdwg.mxu0
    %v1435 = vand.u32 %v244, 4294901760
    %1436 = vmatprep.subr.mxu0 %v1435
    %v1437 = vand.u32 %v243, 4294901760
    %1438 = vmatpush1.msra.mxu0 %v1437
    %1439 = vmatprep.subr.mxu0 0.0
    %1440 = vmatpush1.msra.mxu0 0.0
    %1441 = vmatprep.subr.mxu0 0.0
    %1442 = vmatpush1.msra.mxu0 0.0
    %1443 = vmatprep.subr.mxu0 0.0
    %1444 = vmatpush1.msra.mxu0 0.0
    %1445 = vmatprep.subr.mxu0 0.0
    %1446 = vmatpush1.msra.mxu0 0.0
    %1447 = vmatprep.subr.mxu0 0.0
    %1448 = vmatpush1.msra.mxu0 0.0
    %1449 = vmatprep.subr.mxu0 0.0
    %1450 = vmatpush1.msra.mxu0 0.0
    %1451 = vmatprep.subr.mxu0 0.0
    %1452 = vmatpush1.msra.mxu0 0.0
    %1453 = vmatprep.subr.mxu0 0.0
    %1454 = vmatpush1.msra.mxu0 0.0
    %1455 = vmatprep.subr.mxu0 0.0
    %1456 = vmatpush1.msra.mxu0 0.0
    %1457 = vmatprep.subr.mxu0 0.0
    %1458 = vmatpush1.msra.mxu0 0.0
    %1459 = vmatprep.subr.mxu0 0.0
    %1460 = vmatpush1.msra.mxu0 0.0
    %1461 = vmatprep.subr.mxu0 0.0
    %1462 = vmatpush1.msra.mxu0 0.0
    %1463 = vmatprep.subr.mxu0 0.0
    %1464 = vmatpush1.msra.mxu0 0.0
    %1465 = vmatprep.subr.mxu0 0.0
    %1466 = vmatpush1.msra.mxu0 0.0
    %1467 = vmatprep.subr.mxu0 0.0
    %1468 = vmatpush1.msra.mxu0 0.0
    %1469 = vmatprep.subr.mxu0 0.0
    %1470 = vmatpush1.msra.mxu0 0.0
    %1471 = vmatprep.subr.mxu0 0.0
    %1472 = vmatpush1.msra.mxu0 0.0
    %1473 = vmatprep.subr.mxu0 0.0
    %1474 = vmatpush1.msra.mxu0 0.0
    %1475 = vmatprep.subr.mxu0 0.0
    %1476 = vmatpush1.msra.mxu0 0.0
    %1477 = vmatprep.subr.mxu0 0.0
    %1478 = vmatpush1.msra.mxu0 0.0
    %1479 = vmatprep.subr.mxu0 0.0
    %1480 = vmatpush1.msra.mxu0 0.0
    %1481 = vmatprep.subr.mxu0 0.0
    %1482 = vmatpush1.msra.mxu0 0.0
    %1483 = vmatprep.subr.mxu0 0.0
    %1484 = vmatpush1.msra.mxu0 0.0
    %1485 = vmatprep.subr.mxu0 0.0
    %1486 = vmatpush1.msra.mxu0 0.0
    %1487 = vmatprep.subr.mxu0 0.0
    %1488 = vmatpush1.msra.mxu0 0.0
    %1489 = vmatprep.subr.mxu0 0.0
    %1490 = vmatpush1.msra.mxu0 0.0
    %1491 = vmatprep.subr.mxu0 0.0
    %1492 = vmatpush1.msra.mxu0 0.0
    %1493 = vmatprep.subr.mxu0 0.0
    %1494 = vmatpush1.msra.mxu0 0.0
    %1495 = vmatprep.subr.mxu0 0.0
    %1496 = vmatpush1.msra.mxu0 0.0
    %1497 = vmatprep.subr.mxu0 0.0
    %1498 = vmatpush1.msra.mxu0 0.0
    %1499 = vmatprep.subr.mxu0 0.0
    %1500 = vmatpush1.msra.mxu0 0.0
    %1501 = vmatprep.mubr.f32.mxu0 0.0
    %v1502 = vand.u32 %v1167, 4294901760
    %v1503 = vsub.f32 %v1167, %v1502
    %v1504 = vand.u32 %v1503, 4294901760
    %1505 = vmatmul.mubr.f32.gmra.mrb[0].mxu0 %v1504
    %v1506 = vpop.f32.mrb[0].mxu0
    %v1507 = vadd.f32 %v1423, %v1506
    %v1508 = vpop.f32.mrb[0].mxu0
    %v1509 = vadd.f32 %v1425, %v1508
    %1510 = vmatprep.mubr.f32.mxu0 0.0
    %v1511 = vand.u32 %v1170, 4294901760
    %v1512 = vsub.f32 %v1170, %v1511
    %v1513 = vand.u32 %v1512, 4294901760
    %1514 = vmatmul.mubr.f32.gmra.mrb[0].mxu0 %v1513
    %v1515 = vpop.f32.mrb[0].mxu0
    %v1516 = vadd.f32 %v1431, %v1515
    %v1517 = vpop.f32.mrb[0].mxu0
    %v1518 = vadd.f32 %v1433, %v1517
    %1519 = vdwg.mxu0
    %v1520 = vand.u32 %v244, 4294901760
    %v1521 = vsub.f32 %v244, %v1520
    %v1522 = vand.u32 %v1521, 4294901760
    %1523 = vmatprep.subr.mxu0 %v1522
    %v1524 = vand.u32 %v243, 4294901760
    %v1525 = vsub.f32 %v243, %v1524
    %v1526 = vand.u32 %v1525, 4294901760
    %1527 = vmatpush1.msra.mxu0 %v1526
    %1528 = vmatprep.subr.mxu0 0.0
    %1529 = vmatpush1.msra.mxu0 0.0
    %1530 = vmatprep.subr.mxu0 0.0
    %1531 = vmatpush1.msra.mxu0 0.0
    %1532 = vmatprep.subr.mxu0 0.0
    %1533 = vmatpush1.msra.mxu0 0.0
    %1534 = vmatprep.subr.mxu0 0.0
    %1535 = vmatpush1.msra.mxu0 0.0
    %1536 = vmatprep.subr.mxu0 0.0
    %1537 = vmatpush1.msra.mxu0 0.0
    %1538 = vmatprep.subr.mxu0 0.0
    %1539 = vmatpush1.msra.mxu0 0.0
    %1540 = vmatprep.subr.mxu0 0.0
    %1541 = vmatpush1.msra.mxu0 0.0
    %1542 = vmatprep.subr.mxu0 0.0
    %1543 = vmatpush1.msra.mxu0 0.0
    %1544 = vmatprep.subr.mxu0 0.0
    %1545 = vmatpush1.msra.mxu0 0.0
    %1546 = vmatprep.subr.mxu0 0.0
    %1547 = vmatpush1.msra.mxu0 0.0
    %1548 = vmatprep.subr.mxu0 0.0
    %1549 = vmatpush1.msra.mxu0 0.0
    %1550 = vmatprep.subr.mxu0 0.0
    %1551 = vmatpush1.msra.mxu0 0.0
    %1552 = vmatprep.subr.mxu0 0.0
    %1553 = vmatpush1.msra.mxu0 0.0
    %1554 = vmatprep.subr.mxu0 0.0
    %1555 = vmatpush1.msra.mxu0 0.0
    %1556 = vmatprep.subr.mxu0 0.0
    %1557 = vmatpush1.msra.mxu0 0.0
    %1558 = vmatprep.subr.mxu0 0.0
    %1559 = vmatpush1.msra.mxu0 0.0
    %1560 = vmatprep.subr.mxu0 0.0
    %1561 = vmatpush1.msra.mxu0 0.0
    %1562 = vmatprep.subr.mxu0 0.0
    %1563 = vmatpush1.msra.mxu0 0.0
    %1564 = vmatprep.subr.mxu0 0.0
    %1565 = vmatpush1.msra.mxu0 0.0
    %1566 = vmatprep.subr.mxu0 0.0
    %1567 = vmatpush1.msra.mxu0 0.0
    %1568 = vmatprep.subr.mxu0 0.0
    %1569 = vmatpush1.msra.mxu0 0.0
    %1570 = vmatprep.subr.mxu0 0.0
    %1571 = vmatpush1.msra.mxu0 0.0
    %1572 = vmatprep.subr.mxu0 0.0
    %1573 = vmatpush1.msra.mxu0 0.0
    %1574 = vmatprep.subr.mxu0 0.0
    %1575 = vmatpush1.msra.mxu0 0.0
    %1576 = vmatprep.subr.mxu0 0.0
    %1577 = vmatpush1.msra.mxu0 0.0
    %1578 = vmatprep.subr.mxu0 0.0
    %1579 = vmatpush1.msra.mxu0 0.0
    %1580 = vmatprep.subr.mxu0 0.0
    %1581 = vmatpush1.msra.mxu0 0.0
    %1582 = vmatprep.subr.mxu0 0.0
    %1583 = vmatpush1.msra.mxu0 0.0
    %1584 = vmatprep.subr.mxu0 0.0
    %1585 = vmatpush1.msra.mxu0 0.0
    %1586 = vmatprep.subr.mxu0 0.0
    %1587 = vmatpush1.msra.mxu0 0.0
    %1588 = vmatprep.subr.mxu0 0.0
    %1589 = vmatpush1.msra.mxu0 0.0
    %1590 = vmatprep.mubr.f32.mxu0 0.0
    %v1591 = vand.u32 %v1167, 4294901760
    %1592 = vmatmul.mubr.f32.gmra.mrb[0].mxu0 %v1591
    %v1593 = vpop.f32.mrb[0].mxu0
    %v1594 = vadd.f32 %v1507, %v1593
    %v1595 = vpop.f32.mrb[0].mxu0
    %v1596 = vadd.f32 %v1509, %v1595
    %1597 = vmatprep.mubr.f32.mxu0 0.0
    %v1598 = vand.u32 %v1170, 4294901760
    %1599 = vmatmul.mubr.f32.gmra.mrb[0].mxu0 %v1598
    %v1600 = vpop.f32.mrb[0].mxu0
    %v1601 = vadd.f32 %v1516, %v1600
    %v1602 = vpop.f32.mrb[0].mxu0
    %v1603 = vadd.f32 %v1518, %v1602
    %1604 = vdwg.mxu0
    %v1605 = vand.u32 %v244, 4294901760
    %1606 = vmatprep.subr.mxu0 %v1605
    %v1607 = vand.u32 %v243, 4294901760
    %1608 = vmatpush1.msra.mxu0 %v1607
    %1609 = vmatprep.subr.mxu0 0.0
    %1610 = vmatpush1.msra.mxu0 0.0
    %1611 = vmatprep.subr.mxu0 0.0
    %1612 = vmatpush1.msra.mxu0 0.0
    %1613 = vmatprep.subr.mxu0 0.0
    %1614 = vmatpush1.msra.mxu0 0.0
    %1615 = vmatprep.subr.mxu0 0.0
    %1616 = vmatpush1.msra.mxu0 0.0
    %1617 = vmatprep.subr.mxu0 0.0
    %1618 = vmatpush1.msra.mxu0 0.0
    %1619 = vmatprep.subr.mxu0 0.0
    %1620 = vmatpush1.msra.mxu0 0.0
    %1621 = vmatprep.subr.mxu0 0.0
    %1622 = vmatpush1.msra.mxu0 0.0
    %1623 = vmatprep.subr.mxu0 0.0
    %1624 = vmatpush1.msra.mxu0 0.0
    %1625 = vmatprep.subr.mxu0 0.0
    %1626 = vmatpush1.msra.mxu0 0.0
    %1627 = vmatprep.subr.mxu0 0.0
    %1628 = vmatpush1.msra.mxu0 0.0
    %1629 = vmatprep.subr.mxu0 0.0
    %1630 = vmatpush1.msra.mxu0 0.0
    %1631 = vmatprep.subr.mxu0 0.0
    %1632 = vmatpush1.msra.mxu0 0.0
    %1633 = vmatprep.subr.mxu0 0.0
    %1634 = vmatpush1.msra.mxu0 0.0
    %1635 = vmatprep.subr.mxu0 0.0
    %1636 = vmatpush1.msra.mxu0 0.0
    %1637 = vmatprep.subr.mxu0 0.0
    %1638 = vmatpush1.msra.mxu0 0.0
    %1639 = vmatprep.subr.mxu0 0.0
    %1640 = vmatpush1.msra.mxu0 0.0
    %1641 = vmatprep.subr.mxu0 0.0
    %1642 = vmatpush1.msra.mxu0 0.0
    %1643 = vmatprep.subr.mxu0 0.0
    %1644 = vmatpush1.msra.mxu0 0.0
    %1645 = vmatprep.subr.mxu0 0.0
    %1646 = vmatpush1.msra.mxu0 0.0
    %1647 = vmatprep.subr.mxu0 0.0
    %1648 = vmatpush1.msra.mxu0 0.0
    %1649 = vmatprep.subr.mxu0 0.0
    %1650 = vmatpush1.msra.mxu0 0.0
    %1651 = vmatprep.subr.mxu0 0.0
    %1652 = vmatpush1.msra.mxu0 0.0
    %1653 = vmatprep.subr.mxu0 0.0
    %1654 = vmatpush1.msra.mxu0 0.0
    %1655 = vmatprep.subr.mxu0 0.0
    %1656 = vmatpush1.msra.mxu0 0.0
    %1657 = vmatprep.subr.mxu0 0.0
    %1658 = vmatpush1.msra.mxu0 0.0
    %1659 = vmatprep.subr.mxu0 0.0
    %1660 = vmatpush1.msra.mxu0 0.0
    %1661 = vmatprep.subr.mxu0 0.0
    %1662 = vmatpush1.msra.mxu0 0.0
    %1663 = vmatprep.subr.mxu0 0.0
    %1664 = vmatpush1.msra.mxu0 0.0
    %1665 = vmatprep.subr.mxu0 0.0
    %1666 = vmatpush1.msra.mxu0 0.0
    %1667 = vmatprep.subr.mxu0 0.0
    %1668 = vmatpush1.msra.mxu0 0.0
    %1669 = vmatprep.subr.mxu0 0.0
    %1670 = vmatpush1.msra.mxu0 0.0
    %1671 = vmatprep.mubr.f32.mxu0 0.0
    %v1672 = vand.u32 %v1167, 4294901760
    %1673 = vmatmul.mubr.f32.gmra.mrb[0].mxu0 %v1672
    %v1674 = vpop.f32.mrb[0].mxu0
    %v1675 = vadd.f32 %v1594, %v1674
    %v1676 = vpop.f32.mrb[0].mxu0
    %v1677 = vadd.f32 %v1596, %v1676
    %1678 = vmatprep.mubr.f32.mxu0 0.0
    %v1679 = vand.u32 %v1170, 4294901760
    %1680 = vmatmul.mubr.f32.gmra.mrb[0].mxu0 %v1679
    %v1681 = vpop.f32.mrb[0].mxu0
    %v1682 = vadd.f32 %v1601, %v1681
    %v1683 = vpop.f32.mrb[0].mxu0
    %v1684 = vadd.f32 %v1603, %v1683
    %1685 = vdwg.mxu0
    %v1686 = vsub.f32 %v29, %v1675
    %v1687 = vsub.f32 %v30, %v1677
    %v1688 = vsub.f32 %v31, %v1682
    %v1689 = vsub.f32 %v32, %v1684
    %v1690 = vmul.f32 %v1686, %v1686
    %v1691 = vmul.f32 %v1687, %v1687
    %v1692 = vmul.f32 %v1688, %v1688
    %v1693 = vmul.f32 %v1689, %v1689
    %1694 = vmatprep.subr.mxu0 0.0
    %v1695 = vand.u32 %v200, 4294901760
    %1696 = vmatpush1.msra.mxu0 %v1695
    %1697 = vmatprep.subr.mxu0 0.0
    %v1698 = vand.u32 %v201, 4294901760
    %1699 = vmatpush1.msra.mxu0 %v1698
    %1700 = vmatprep.subr.mxu0 0.0
    %v1701 = vand.u32 %v202, 4294901760
    %1702 = vmatpush1.msra.mxu0 %v1701
    %1703 = vmatprep.subr.mxu0 0.0
    %v1704 = vand.u32 %v203, 4294901760
    %1705 = vmatpush1.msra.mxu0 %v1704
    %1706 = vmatprep.subr.mxu0 0.0
    %v1707 = vand.u32 %v204, 4294901760
    %1708 = vmatpush1.msra.mxu0 %v1707
    %1709 = vmatprep.subr.mxu0 0.0
    %v1710 = vand.u32 %v205, 4294901760
    %1711 = vmatpush1.msra.mxu0 %v1710
    %1712 = vmatprep.subr.mxu0 0.0
    %v1713 = vand.u32 %v206, 4294901760
    %1714 = vmatpush1.msra.mxu0 %v1713
    %1715 = vmatprep.subr.mxu0 0.0
    %v1716 = vand.u32 %v207, 4294901760
    %1717 = vmatpush1.msra.mxu0 %v1716
    %1718 = vmatprep.subr.mxu0 0.0
    %v1719 = vand.u32 %v208, 4294901760
    %1720 = vmatpush1.msra.mxu0 %v1719
    %1721 = vmatprep.subr.mxu0 0.0
    %v1722 = vand.u32 %v209, 4294901760
    %1723 = vmatpush1.msra.mxu0 %v1722
    %1724 = vmatprep.subr.mxu0 0.0
    %v1725 = vand.u32 %v210, 4294901760
    %1726 = vmatpush1.msra.mxu0 %v1725
    %1727 = vmatprep.subr.mxu0 0.0
    %v1728 = vand.u32 %v211, 4294901760
    %1729 = vmatpush1.msra.mxu0 %v1728
    %1730 = vmatprep.subr.mxu0 0.0
    %v1731 = vand.u32 %v212, 4294901760
    %1732 = vmatpush1.msra.mxu0 %v1731
    %1733 = vmatprep.subr.mxu0 0.0
    %v1734 = vand.u32 %v213, 4294901760
    %1735 = vmatpush1.msra.mxu0 %v1734
    %1736 = vmatprep.subr.mxu0 0.0
    %v1737 = vand.u32 %v214, 4294901760
    %1738 = vmatpush1.msra.mxu0 %v1737
    %1739 = vmatprep.subr.mxu0 0.0
    %v1740 = vand.u32 %v215, 4294901760
    %1741 = vmatpush1.msra.mxu0 %v1740
    %1742 = vmatprep.subr.mxu0 0.0
    %v1743 = vand.u32 %v216, 4294901760
    %1744 = vmatpush1.msra.mxu0 %v1743
    %1745 = vmatprep.subr.mxu0 0.0
    %v1746 = vand.u32 %v217, 4294901760
    %1747 = vmatpush1.msra.mxu0 %v1746
    %1748 = vmatprep.subr.mxu0 0.0
    %v1749 = vand.u32 %v218, 4294901760
    %1750 = vmatpush1.msra.mxu0 %v1749
    %1751 = vmatprep.subr.mxu0 0.0
    %v1752 = vand.u32 %v219, 4294901760
    %1753 = vmatpush1.msra.mxu0 %v1752
    %1754 = vmatprep.subr.mxu0 0.0
    %v1755 = vand.u32 %v220, 4294901760
    %1756 = vmatpush1.msra.mxu0 %v1755
    %1757 = vmatprep.subr.mxu0 0.0
    %v1758 = vand.u32 %v221, 4294901760
    %1759 = vmatpush1.msra.mxu0 %v1758
    %1760 = vmatprep.subr.mxu0 0.0
    %v1761 = vand.u32 %v222, 4294901760
    %1762 = vmatpush1.msra.mxu0 %v1761
    %1763 = vmatprep.subr.mxu0 0.0
    %v1764 = vand.u32 %v223, 4294901760
    %1765 = vmatpush1.msra.mxu0 %v1764
    %1766 = vmatprep.subr.mxu0 0.0
    %v1767 = vand.u32 %v224, 4294901760
    %1768 = vmatpush1.msra.mxu0 %v1767
    %1769 = vmatprep.subr.mxu0 0.0
    %v1770 = vand.u32 %v225, 4294901760
    %1771 = vmatpush1.msra.mxu0 %v1770
    %1772 = vmatprep.subr.mxu0 0.0
    %v1773 = vand.u32 %v226, 4294901760
    %1774 = vmatpush1.msra.mxu0 %v1773
    %1775 = vmatprep.subr.mxu0 0.0
    %v1776 = vand.u32 %v227, 4294901760
    %1777 = vmatpush1.msra.mxu0 %v1776
    %1778 = vmatprep.subr.mxu0 0.0
    %v1779 = vand.u32 %v228, 4294901760
    %1780 = vmatpush1.msra.mxu0 %v1779
    %1781 = vmatprep.subr.mxu0 0.0
    %v1782 = vand.u32 %v229, 4294901760
    %1783 = vmatpush1.msra.mxu0 %v1782
    %1784 = vmatprep.subr.mxu0 0.0
    %v1785 = vand.u32 %v230, 4294901760
    %1786 = vmatpush1.msra.mxu0 %v1785
    %1787 = vmatprep.subr.mxu0 0.0
    %v1788 = vand.u32 %v231, 4294901760
    %1789 = vmatpush1.msra.mxu0 %v1788
    %v1790 = vand.u32 %v1691, 4294901760
    %v1791 = vsub.f32 %v1691, %v1790
    %v1792 = vand.u32 %v1791, 4294901760
    %v1793 = vsub.f32 %v1791, %v1792
    %v1794 = vand.u32 %v1793, 4294901760
    %1795 = vmatprep.mubr.f32.mxu0 %v1794
    %v1796 = vand.u32 %v1690, 4294901760
    %v1797 = vsub.f32 %v1690, %v1796
    %v1798 = vand.u32 %v1797, 4294901760
    %v1799 = vsub.f32 %v1797, %v1798
    %v1800 = vand.u32 %v1799, 4294901760
    %1801 = vmatmul.mubr.f32.gmra.mrb[0].mxu0 %v1800
    %v1802 = vpop.f32.mrb[0].mxu0
    %v1803 = vadd.f32 0.0, %v1802
    %v1804 = vpop.f32.mrb[0].mxu0
    %v1805 = vand.u32 %v1693, 4294901760
    %v1806 = vsub.f32 %v1693, %v1805
    %v1807 = vand.u32 %v1806, 4294901760
    %v1808 = vsub.f32 %v1806, %v1807
    %v1809 = vand.u32 %v1808, 4294901760
    %1810 = vmatprep.mubr.f32.mxu0 %v1809
    %v1811 = vand.u32 %v1692, 4294901760
    %v1812 = vsub.f32 %v1692, %v1811
    %v1813 = vand.u32 %v1812, 4294901760
    %v1814 = vsub.f32 %v1812, %v1813
    %v1815 = vand.u32 %v1814, 4294901760
    %1816 = vmatmul.mubr.f32.gmra.mrb[0].mxu0 %v1815
    %v1817 = vpop.f32.mrb[0].mxu0
    %v1818 = vadd.f32 0.0, %v1817
    %v1819 = vpop.f32.mrb[0].mxu0
    %1820 = vdwg.mxu0
    %1821 = vmatprep.subr.mxu0 0.0
    %v1822 = vand.u32 %v200, 4294901760
    %v1823 = vsub.f32 %v200, %v1822
    %v1824 = vand.u32 %v1823, 4294901760
    %v1825 = vsub.f32 %v1823, %v1824
    %v1826 = vand.u32 %v1825, 4294901760
    %1827 = vmatpush1.msra.mxu0 %v1826
    %1828 = vmatprep.subr.mxu0 0.0
    %v1829 = vand.u32 %v201, 4294901760
    %v1830 = vsub.f32 %v201, %v1829
    %v1831 = vand.u32 %v1830, 4294901760
    %v1832 = vsub.f32 %v1830, %v1831
    %v1833 = vand.u32 %v1832, 4294901760
    %1834 = vmatpush1.msra.mxu0 %v1833
    %1835 = vmatprep.subr.mxu0 0.0
    %v1836 = vand.u32 %v202, 4294901760
    %v1837 = vsub.f32 %v202, %v1836
    %v1838 = vand.u32 %v1837, 4294901760
    %v1839 = vsub.f32 %v1837, %v1838
    %v1840 = vand.u32 %v1839, 4294901760
    %1841 = vmatpush1.msra.mxu0 %v1840
    %1842 = vmatprep.subr.mxu0 0.0
    %v1843 = vand.u32 %v203, 4294901760
    %v1844 = vsub.f32 %v203, %v1843
    %v1845 = vand.u32 %v1844, 4294901760
    %v1846 = vsub.f32 %v1844, %v1845
    %v1847 = vand.u32 %v1846, 4294901760
    %1848 = vmatpush1.msra.mxu0 %v1847
    %1849 = vmatprep.subr.mxu0 0.0
    %v1850 = vand.u32 %v204, 4294901760
    %v1851 = vsub.f32 %v204, %v1850
    %v1852 = vand.u32 %v1851, 4294901760
    %v1853 = vsub.f32 %v1851, %v1852
    %v1854 = vand.u32 %v1853, 4294901760
    %1855 = vmatpush1.msra.mxu0 %v1854
    %1856 = vmatprep.subr.mxu0 0.0
    %v1857 = vand.u32 %v205, 4294901760
    %v1858 = vsub.f32 %v205, %v1857
    %v1859 = vand.u32 %v1858, 4294901760
    %v1860 = vsub.f32 %v1858, %v1859
    %v1861 = vand.u32 %v1860, 4294901760
    %1862 = vmatpush1.msra.mxu0 %v1861
    %1863 = vmatprep.subr.mxu0 0.0
    %v1864 = vand.u32 %v206, 4294901760
    %v1865 = vsub.f32 %v206, %v1864
    %v1866 = vand.u32 %v1865, 4294901760
    %v1867 = vsub.f32 %v1865, %v1866
    %v1868 = vand.u32 %v1867, 4294901760
    %1869 = vmatpush1.msra.mxu0 %v1868
    %1870 = vmatprep.subr.mxu0 0.0
    %v1871 = vand.u32 %v207, 4294901760
    %v1872 = vsub.f32 %v207, %v1871
    %v1873 = vand.u32 %v1872, 4294901760
    %v1874 = vsub.f32 %v1872, %v1873
    %v1875 = vand.u32 %v1874, 4294901760
    %1876 = vmatpush1.msra.mxu0 %v1875
    %1877 = vmatprep.subr.mxu0 0.0
    %v1878 = vand.u32 %v208, 4294901760
    %v1879 = vsub.f32 %v208, %v1878
    %v1880 = vand.u32 %v1879, 4294901760
    %v1881 = vsub.f32 %v1879, %v1880
    %v1882 = vand.u32 %v1881, 4294901760
    %1883 = vmatpush1.msra.mxu0 %v1882
    %1884 = vmatprep.subr.mxu0 0.0
    %v1885 = vand.u32 %v209, 4294901760
    %v1886 = vsub.f32 %v209, %v1885
    %v1887 = vand.u32 %v1886, 4294901760
    %v1888 = vsub.f32 %v1886, %v1887
    %v1889 = vand.u32 %v1888, 4294901760
    %1890 = vmatpush1.msra.mxu0 %v1889
    %1891 = vmatprep.subr.mxu0 0.0
    %v1892 = vand.u32 %v210, 4294901760
    %v1893 = vsub.f32 %v210, %v1892
    %v1894 = vand.u32 %v1893, 4294901760
    %v1895 = vsub.f32 %v1893, %v1894
    %v1896 = vand.u32 %v1895, 4294901760
    %1897 = vmatpush1.msra.mxu0 %v1896
    %1898 = vmatprep.subr.mxu0 0.0
    %v1899 = vand.u32 %v211, 4294901760
    %v1900 = vsub.f32 %v211, %v1899
    %v1901 = vand.u32 %v1900, 4294901760
    %v1902 = vsub.f32 %v1900, %v1901
    %v1903 = vand.u32 %v1902, 4294901760
    %1904 = vmatpush1.msra.mxu0 %v1903
    %1905 = vmatprep.subr.mxu0 0.0
    %v1906 = vand.u32 %v212, 4294901760
    %v1907 = vsub.f32 %v212, %v1906
    %v1908 = vand.u32 %v1907, 4294901760
    %v1909 = vsub.f32 %v1907, %v1908
    %v1910 = vand.u32 %v1909, 4294901760
    %1911 = vmatpush1.msra.mxu0 %v1910
    %1912 = vmatprep.subr.mxu0 0.0
    %v1913 = vand.u32 %v213, 4294901760
    %v1914 = vsub.f32 %v213, %v1913
    %v1915 = vand.u32 %v1914, 4294901760
    %v1916 = vsub.f32 %v1914, %v1915
    %v1917 = vand.u32 %v1916, 4294901760
    %1918 = vmatpush1.msra.mxu0 %v1917
    %1919 = vmatprep.subr.mxu0 0.0
    %v1920 = vand.u32 %v214, 4294901760
    %v1921 = vsub.f32 %v214, %v1920
    %v1922 = vand.u32 %v1921, 4294901760
    %v1923 = vsub.f32 %v1921, %v1922
    %v1924 = vand.u32 %v1923, 4294901760
    %1925 = vmatpush1.msra.mxu0 %v1924
    %1926 = vmatprep.subr.mxu0 0.0
    %v1927 = vand.u32 %v215, 4294901760
    %v1928 = vsub.f32 %v215, %v1927
    %v1929 = vand.u32 %v1928, 4294901760
    %v1930 = vsub.f32 %v1928, %v1929
    %v1931 = vand.u32 %v1930, 4294901760
    %1932 = vmatpush1.msra.mxu0 %v1931
    %1933 = vmatprep.subr.mxu0 0.0
    %v1934 = vand.u32 %v216, 4294901760
    %v1935 = vsub.f32 %v216, %v1934
    %v1936 = vand.u32 %v1935, 4294901760
    %v1937 = vsub.f32 %v1935, %v1936
    %v1938 = vand.u32 %v1937, 4294901760
    %1939 = vmatpush1.msra.mxu0 %v1938
    %1940 = vmatprep.subr.mxu0 0.0
    %v1941 = vand.u32 %v217, 4294901760
    %v1942 = vsub.f32 %v217, %v1941
    %v1943 = vand.u32 %v1942, 4294901760
    %v1944 = vsub.f32 %v1942, %v1943
    %v1945 = vand.u32 %v1944, 4294901760
    %1946 = vmatpush1.msra.mxu0 %v1945
    %1947 = vmatprep.subr.mxu0 0.0
    %v1948 = vand.u32 %v218, 4294901760
    %v1949 = vsub.f32 %v218, %v1948
    %v1950 = vand.u32 %v1949, 4294901760
    %v1951 = vsub.f32 %v1949, %v1950
    %v1952 = vand.u32 %v1951, 4294901760
    %1953 = vmatpush1.msra.mxu0 %v1952
    %1954 = vmatprep.subr.mxu0 0.0
    %v1955 = vand.u32 %v219, 4294901760
    %v1956 = vsub.f32 %v219, %v1955
    %v1957 = vand.u32 %v1956, 4294901760
    %v1958 = vsub.f32 %v1956, %v1957
    %v1959 = vand.u32 %v1958, 4294901760
    %1960 = vmatpush1.msra.mxu0 %v1959
    %1961 = vmatprep.subr.mxu0 0.0
    %v1962 = vand.u32 %v220, 4294901760
    %v1963 = vsub.f32 %v220, %v1962
    %v1964 = vand.u32 %v1963, 4294901760
    %v1965 = vsub.f32 %v1963, %v1964
    %v1966 = vand.u32 %v1965, 4294901760
    %1967 = vmatpush1.msra.mxu0 %v1966
    %1968 = vmatprep.subr.mxu0 0.0
    %v1969 = vand.u32 %v221, 4294901760
    %v1970 = vsub.f32 %v221, %v1969
    %v1971 = vand.u32 %v1970, 4294901760
    %v1972 = vsub.f32 %v1970, %v1971
    %v1973 = vand.u32 %v1972, 4294901760
    %1974 = vmatpush1.msra.mxu0 %v1973
    %1975 = vmatprep.subr.mxu0 0.0
    %v1976 = vand.u32 %v222, 4294901760
    %v1977 = vsub.f32 %v222, %v1976
    %v1978 = vand.u32 %v1977, 4294901760
    %v1979 = vsub.f32 %v1977, %v1978
    %v1980 = vand.u32 %v1979, 4294901760
    %1981 = vmatpush1.msra.mxu0 %v1980
    %1982 = vmatprep.subr.mxu0 0.0
    %v1983 = vand.u32 %v223, 4294901760
    %v1984 = vsub.f32 %v223, %v1983
    %v1985 = vand.u32 %v1984, 4294901760
    %v1986 = vsub.f32 %v1984, %v1985
    %v1987 = vand.u32 %v1986, 4294901760
    %1988 = vmatpush1.msra.mxu0 %v1987
    %1989 = vmatprep.subr.mxu0 0.0
    %v1990 = vand.u32 %v224, 4294901760
    %v1991 = vsub.f32 %v224, %v1990
    %v1992 = vand.u32 %v1991, 4294901760
    %v1993 = vsub.f32 %v1991, %v1992
    %v1994 = vand.u32 %v1993, 4294901760
    %1995 = vmatpush1.msra.mxu0 %v1994
    %1996 = vmatprep.subr.mxu0 0.0
    %v1997 = vand.u32 %v225, 4294901760
    %v1998 = vsub.f32 %v225, %v1997
    %v1999 = vand.u32 %v1998, 4294901760
    %v2000 = vsub.f32 %v1998, %v1999
    %v2001 = vand.u32 %v2000, 4294901760
    %2002 = vmatpush1.msra.mxu0 %v2001
    %2003 = vmatprep.subr.mxu0 0.0
    %v2004 = vand.u32 %v226, 4294901760
    %v2005 = vsub.f32 %v226, %v2004
    %v2006 = vand.u32 %v2005, 4294901760
    %v2007 = vsub.f32 %v2005, %v2006
    %v2008 = vand.u32 %v2007, 4294901760
    %2009 = vmatpush1.msra.mxu0 %v2008
    %2010 = vmatprep.subr.mxu0 0.0
    %v2011 = vand.u32 %v227, 4294901760
    %v2012 = vsub.f32 %v227, %v2011
    %v2013 = vand.u32 %v2012, 4294901760
    %v2014 = vsub.f32 %v2012, %v2013
    %v2015 = vand.u32 %v2014, 4294901760
    %2016 = vmatpush1.msra.mxu0 %v2015
    %2017 = vmatprep.subr.mxu0 0.0
    %v2018 = vand.u32 %v228, 4294901760
    %v2019 = vsub.f32 %v228, %v2018
    %v2020 = vand.u32 %v2019, 4294901760
    %v2021 = vsub.f32 %v2019, %v2020
    %v2022 = vand.u32 %v2021, 4294901760
    %2023 = vmatpush1.msra.mxu0 %v2022
    %2024 = vmatprep.subr.mxu0 0.0
    %v2025 = vand.u32 %v229, 4294901760
    %v2026 = vsub.f32 %v229, %v2025
    %v2027 = vand.u32 %v2026, 4294901760
    %v2028 = vsub.f32 %v2026, %v2027
    %v2029 = vand.u32 %v2028, 4294901760
    %2030 = vmatpush1.msra.mxu0 %v2029
    %2031 = vmatprep.subr.mxu0 0.0
    %v2032 = vand.u32 %v230, 4294901760
    %v2033 = vsub.f32 %v230, %v2032
    %v2034 = vand.u32 %v2033, 4294901760
    %v2035 = vsub.f32 %v2033, %v2034
    %v2036 = vand.u32 %v2035, 4294901760
    %2037 = vmatpush1.msra.mxu0 %v2036
    %2038 = vmatprep.subr.mxu0 0.0
    %v2039 = vand.u32 %v231, 4294901760
    %v2040 = vsub.f32 %v231, %v2039
    %v2041 = vand.u32 %v2040, 4294901760
    %v2042 = vsub.f32 %v2040, %v2041
    %v2043 = vand.u32 %v2042, 4294901760
    %2044 = vmatpush1.msra.mxu0 %v2043
    %v2045 = vand.u32 %v1691, 4294901760
    %2046 = vmatprep.mubr.f32.mxu0 %v2045
    %v2047 = vand.u32 %v1690, 4294901760
    %2048 = vmatmul.mubr.f32.gmra.mrb[0].mxu0 %v2047
    %v2049 = vpop.f32.mrb[0].mxu0
    %v2050 = vadd.f32 %v1803, %v2049
    %v2051 = vpop.f32.mrb[0].mxu0
    %v2052 = vand.u32 %v1693, 4294901760
    %2053 = vmatprep.mubr.f32.mxu0 %v2052
    %v2054 = vand.u32 %v1692, 4294901760
    %2055 = vmatmul.mubr.f32.gmra.mrb[0].mxu0 %v2054
    %v2056 = vpop.f32.mrb[0].mxu0
    %v2057 = vadd.f32 %v1818, %v2056
    %v2058 = vpop.f32.mrb[0].mxu0
    %2059 = vdwg.mxu0
    %2060 = vmatprep.subr.mxu0 0.0
    %v2061 = vand.u32 %v200, 4294901760
    %v2062 = vsub.f32 %v200, %v2061
    %2063 = vmatpush1.msra.mxu0 %v2062
    %2064 = vmatprep.subr.mxu0 0.0
    %v2065 = vand.u32 %v201, 4294901760
    %v2066 = vsub.f32 %v201, %v2065
    %2067 = vmatpush1.msra.mxu0 %v2066
    %2068 = vmatprep.subr.mxu0 0.0
    %v2069 = vand.u32 %v202, 4294901760
    %v2070 = vsub.f32 %v202, %v2069
    %2071 = vmatpush1.msra.mxu0 %v2070
    %2072 = vmatprep.subr.mxu0 0.0
    %v2073 = vand.u32 %v203, 4294901760
    %v2074 = vsub.f32 %v203, %v2073
    %2075 = vmatpush1.msra.mxu0 %v2074
    %2076 = vmatprep.subr.mxu0 0.0
    %v2077 = vand.u32 %v204, 4294901760
    %v2078 = vsub.f32 %v204, %v2077
    %2079 = vmatpush1.msra.mxu0 %v2078
    %2080 = vmatprep.subr.mxu0 0.0
    %v2081 = vand.u32 %v205, 4294901760
    %v2082 = vsub.f32 %v205, %v2081
    %2083 = vmatpush1.msra.mxu0 %v2082
    %2084 = vmatprep.subr.mxu0 0.0
    %v2085 = vand.u32 %v206, 4294901760
    %v2086 = vsub.f32 %v206, %v2085
    %2087 = vmatpush1.msra.mxu0 %v2086
    %2088 = vmatprep.subr.mxu0 0.0
    %v2089 = vand.u32 %v207, 4294901760
    %v2090 = vsub.f32 %v207, %v2089
    %2091 = vmatpush1.msra.mxu0 %v2090
    %2092 = vmatprep.subr.mxu0 0.0
    %v2093 = vand.u32 %v208, 4294901760
    %v2094 = vsub.f32 %v208, %v2093
    %2095 = vmatpush1.msra.mxu0 %v2094
    %2096 = vmatprep.subr.mxu0 0.0
    %v2097 = vand.u32 %v209, 4294901760
    %v2098 = vsub.f32 %v209, %v2097
    %2099 = vmatpush1.msra.mxu0 %v2098
    %2100 = vmatprep.subr.mxu0 0.0
    %v2101 = vand.u32 %v210, 4294901760
    %v2102 = vsub.f32 %v210, %v2101
    %2103 = vmatpush1.msra.mxu0 %v2102
    %2104 = vmatprep.subr.mxu0 0.0
    %v2105 = vand.u32 %v211, 4294901760
    %v2106 = vsub.f32 %v211, %v2105
    %2107 = vmatpush1.msra.mxu0 %v2106
    %2108 = vmatprep.subr.mxu0 0.0
    %v2109 = vand.u32 %v212, 4294901760
    %v2110 = vsub.f32 %v212, %v2109
    %2111 = vmatpush1.msra.mxu0 %v2110
    %2112 = vmatprep.subr.mxu0 0.0
    %v2113 = vand.u32 %v213, 4294901760
    %v2114 = vsub.f32 %v213, %v2113
    %2115 = vmatpush1.msra.mxu0 %v2114
    %2116 = vmatprep.subr.mxu0 0.0
    %v2117 = vand.u32 %v214, 4294901760
    %v2118 = vsub.f32 %v214, %v2117
    %2119 = vmatpush1.msra.mxu0 %v2118
    %2120 = vmatprep.subr.mxu0 0.0
    %v2121 = vand.u32 %v215, 4294901760
    %v2122 = vsub.f32 %v215, %v2121
    %2123 = vmatpush1.msra.mxu0 %v2122
    %2124 = vmatprep.subr.mxu0 0.0
    %v2125 = vand.u32 %v216, 4294901760
    %v2126 = vsub.f32 %v216, %v2125
    %2127 = vmatpush1.msra.mxu0 %v2126
    %2128 = vmatprep.subr.mxu0 0.0
    %v2129 = vand.u32 %v217, 4294901760
    %v2130 = vsub.f32 %v217, %v2129
    %2131 = vmatpush1.msra.mxu0 %v2130
    %2132 = vmatprep.subr.mxu0 0.0
    %v2133 = vand.u32 %v218, 4294901760
    %v2134 = vsub.f32 %v218, %v2133
    %2135 = vmatpush1.msra.mxu0 %v2134
    %2136 = vmatprep.subr.mxu0 0.0
    %v2137 = vand.u32 %v219, 4294901760
    %v2138 = vsub.f32 %v219, %v2137
    %2139 = vmatpush1.msra.mxu0 %v2138
    %2140 = vmatprep.subr.mxu0 0.0
    %v2141 = vand.u32 %v220, 4294901760
    %v2142 = vsub.f32 %v220, %v2141
    %2143 = vmatpush1.msra.mxu0 %v2142
    %2144 = vmatprep.subr.mxu0 0.0
    %v2145 = vand.u32 %v221, 4294901760
    %v2146 = vsub.f32 %v221, %v2145
    %2147 = vmatpush1.msra.mxu0 %v2146
    %2148 = vmatprep.subr.mxu0 0.0
    %v2149 = vand.u32 %v222, 4294901760
    %v2150 = vsub.f32 %v222, %v2149
    %2151 = vmatpush1.msra.mxu0 %v2150
    %2152 = vmatprep.subr.mxu0 0.0
    %v2153 = vand.u32 %v223, 4294901760
    %v2154 = vsub.f32 %v223, %v2153
    %2155 = vmatpush1.msra.mxu0 %v2154
    %2156 = vmatprep.subr.mxu0 0.0
    %v2157 = vand.u32 %v224, 4294901760
    %v2158 = vsub.f32 %v224, %v2157
    %2159 = vmatpush1.msra.mxu0 %v2158
    %2160 = vmatprep.subr.mxu0 0.0
    %v2161 = vand.u32 %v225, 4294901760
    %v2162 = vsub.f32 %v225, %v2161
    %2163 = vmatpush1.msra.mxu0 %v2162
    %2164 = vmatprep.subr.mxu0 0.0
    %v2165 = vand.u32 %v226, 4294901760
    %v2166 = vsub.f32 %v226, %v2165
    %2167 = vmatpush1.msra.mxu0 %v2166
    %2168 = vmatprep.subr.mxu0 0.0
    %v2169 = vand.u32 %v227, 4294901760
    %v2170 = vsub.f32 %v227, %v2169
    %2171 = vmatpush1.msra.mxu0 %v2170
    %2172 = vmatprep.subr.mxu0 0.0
    %v2173 = vand.u32 %v228, 4294901760
    %v2174 = vsub.f32 %v228, %v2173
    %2175 = vmatpush1.msra.mxu0 %v2174
    %2176 = vmatprep.subr.mxu0 0.0
    %v2177 = vand.u32 %v229, 4294901760
    %v2178 = vsub.f32 %v229, %v2177
    %2179 = vmatpush1.msra.mxu0 %v2178
    %2180 = vmatprep.subr.mxu0 0.0
    %v2181 = vand.u32 %v230, 4294901760
    %v2182 = vsub.f32 %v230, %v2181
    %2183 = vmatpush1.msra.mxu0 %v2182
    %2184 = vmatprep.subr.mxu0 0.0
    %v2185 = vand.u32 %v231, 4294901760
    %v2186 = vsub.f32 %v231, %v2185
    %2187 = vmatpush1.msra.mxu0 %v2186
    %v2188 = vand.u32 %v1691, 4294901760
    %v2189 = vsub.f32 %v1691, %v2188
    %2190 = vmatprep.mubr.f32.mxu0 %v2189
    %v2191 = vand.u32 %v1690, 4294901760
    %v2192 = vsub.f32 %v1690, %v2191
    %2193 = vmatmul.mubr.f32.gmra.mrb[0].mxu0 %v2192
    %v2194 = vpop.f32.mrb[0].mxu0
    %v2195 = vadd.f32 %v2050, %v2194
    %v2196 = vpop.f32.mrb[0].mxu0
    %v2197 = vand.u32 %v1693, 4294901760
    %v2198 = vsub.f32 %v1693, %v2197
    %2199 = vmatprep.mubr.f32.mxu0 %v2198
    %v2200 = vand.u32 %v1692, 4294901760
    %v2201 = vsub.f32 %v1692, %v2200
    %2202 = vmatmul.mubr.f32.gmra.mrb[0].mxu0 %v2201
    %v2203 = vpop.f32.mrb[0].mxu0
    %v2204 = vadd.f32 %v2057, %v2203
    %v2205 = vpop.f32.mrb[0].mxu0
    %2206 = vdwg.mxu0
    %2207 = vmatprep.subr.mxu0 0.0
    %v2208 = vand.u32 %v200, 4294901760
    %2209 = vmatpush1.msra.mxu0 %v2208
    %2210 = vmatprep.subr.mxu0 0.0
    %v2211 = vand.u32 %v201, 4294901760
    %2212 = vmatpush1.msra.mxu0 %v2211
    %2213 = vmatprep.subr.mxu0 0.0
    %v2214 = vand.u32 %v202, 4294901760
    %2215 = vmatpush1.msra.mxu0 %v2214
    %2216 = vmatprep.subr.mxu0 0.0
    %v2217 = vand.u32 %v203, 4294901760
    %2218 = vmatpush1.msra.mxu0 %v2217
    %2219 = vmatprep.subr.mxu0 0.0
    %v2220 = vand.u32 %v204, 4294901760
    %2221 = vmatpush1.msra.mxu0 %v2220
    %2222 = vmatprep.subr.mxu0 0.0
    %v2223 = vand.u32 %v205, 4294901760
    %2224 = vmatpush1.msra.mxu0 %v2223
    %2225 = vmatprep.subr.mxu0 0.0
    %v2226 = vand.u32 %v206, 4294901760
    %2227 = vmatpush1.msra.mxu0 %v2226
    %2228 = vmatprep.subr.mxu0 0.0
    %v2229 = vand.u32 %v207, 4294901760
    %2230 = vmatpush1.msra.mxu0 %v2229
    %2231 = vmatprep.subr.mxu0 0.0
    %v2232 = vand.u32 %v208, 4294901760
    %2233 = vmatpush1.msra.mxu0 %v2232
    %2234 = vmatprep.subr.mxu0 0.0
    %v2235 = vand.u32 %v209, 4294901760
    %2236 = vmatpush1.msra.mxu0 %v2235
    %2237 = vmatprep.subr.mxu0 0.0
    %v2238 = vand.u32 %v210, 4294901760
    %2239 = vmatpush1.msra.mxu0 %v2238
    %2240 = vmatprep.subr.mxu0 0.0
    %v2241 = vand.u32 %v211, 4294901760
    %2242 = vmatpush1.msra.mxu0 %v2241
    %2243 = vmatprep.subr.mxu0 0.0
    %v2244 = vand.u32 %v212, 4294901760
    %2245 = vmatpush1.msra.mxu0 %v2244
    %2246 = vmatprep.subr.mxu0 0.0
    %v2247 = vand.u32 %v213, 4294901760
    %2248 = vmatpush1.msra.mxu0 %v2247
    %2249 = vmatprep.subr.mxu0 0.0
    %v2250 = vand.u32 %v214, 4294901760
    %2251 = vmatpush1.msra.mxu0 %v2250
    %2252 = vmatprep.subr.mxu0 0.0
    %v2253 = vand.u32 %v215, 4294901760
    %2254 = vmatpush1.msra.mxu0 %v2253
    %2255 = vmatprep.subr.mxu0 0.0
    %v2256 = vand.u32 %v216, 4294901760
    %2257 = vmatpush1.msra.mxu0 %v2256
    %2258 = vmatprep.subr.mxu0 0.0
    %v2259 = vand.u32 %v217, 4294901760
    %2260 = vmatpush1.msra.mxu0 %v2259
    %2261 = vmatprep.subr.mxu0 0.0
    %v2262 = vand.u32 %v218, 4294901760
    %2263 = vmatpush1.msra.mxu0 %v2262
    %2264 = vmatprep.subr.mxu0 0.0
    %v2265 = vand.u32 %v219, 4294901760
    %2266 = vmatpush1.msra.mxu0 %v2265
    %2267 = vmatprep.subr.mxu0 0.0
    %v2268 = vand.u32 %v220, 4294901760
    %2269 = vmatpush1.msra.mxu0 %v2268
    %2270 = vmatprep.subr.mxu0 0.0
    %v2271 = vand.u32 %v221, 4294901760
    %2272 = vmatpush1.msra.mxu0 %v2271
    %2273 = vmatprep.subr.mxu0 0.0
    %v2274 = vand.u32 %v222, 4294901760
    %2275 = vmatpush1.msra.mxu0 %v2274
    %2276 = vmatprep.subr.mxu0 0.0
    %v2277 = vand.u32 %v223, 4294901760
    %2278 = vmatpush1.msra.mxu0 %v2277
    %2279 = vmatprep.subr.mxu0 0.0
    %v2280 = vand.u32 %v224, 4294901760
    %2281 = vmatpush1.msra.mxu0 %v2280
    %2282 = vmatprep.subr.mxu0 0.0
    %v2283 = vand.u32 %v225, 4294901760
    %2284 = vmatpush1.msra.mxu0 %v2283
    %2285 = vmatprep.subr.mxu0 0.0
    %v2286 = vand.u32 %v226, 4294901760
    %2287 = vmatpush1.msra.mxu0 %v2286
    %2288 = vmatprep.subr.mxu0 0.0
    %v2289 = vand.u32 %v227, 4294901760
    %2290 = vmatpush1.msra.mxu0 %v2289
    %2291 = vmatprep.subr.mxu0 0.0
    %v2292 = vand.u32 %v228, 4294901760
    %2293 = vmatpush1.msra.mxu0 %v2292
    %2294 = vmatprep.subr.mxu0 0.0
    %v2295 = vand.u32 %v229, 4294901760
    %2296 = vmatpush1.msra.mxu0 %v2295
    %2297 = vmatprep.subr.mxu0 0.0
    %v2298 = vand.u32 %v230, 4294901760
    %2299 = vmatpush1.msra.mxu0 %v2298
    %2300 = vmatprep.subr.mxu0 0.0
    %v2301 = vand.u32 %v231, 4294901760
    %2302 = vmatpush1.msra.mxu0 %v2301
    %v2303 = vand.u32 %v1691, 4294901760
    %v2304 = vsub.f32 %v1691, %v2303
    %v2305 = vand.u32 %v2304, 4294901760
    %2306 = vmatprep.mubr.f32.mxu0 %v2305
    %v2307 = vand.u32 %v1690, 4294901760
    %v2308 = vsub.f32 %v1690, %v2307
    %v2309 = vand.u32 %v2308, 4294901760
    %2310 = vmatmul.mubr.f32.gmra.mrb[0].mxu0 %v2309
    %v2311 = vpop.f32.mrb[0].mxu0
    %v2312 = vadd.f32 %v2195, %v2311
    %v2313 = vpop.f32.mrb[0].mxu0
    %v2314 = vand.u32 %v1693, 4294901760
    %v2315 = vsub.f32 %v1693, %v2314
    %v2316 = vand.u32 %v2315, 4294901760
    %2317 = vmatprep.mubr.f32.mxu0 %v2316
    %v2318 = vand.u32 %v1692, 4294901760
    %v2319 = vsub.f32 %v1692, %v2318
    %v2320 = vand.u32 %v2319, 4294901760
    %2321 = vmatmul.mubr.f32.gmra.mrb[0].mxu0 %v2320
    %v2322 = vpop.f32.mrb[0].mxu0
    %v2323 = vadd.f32 %v2204, %v2322
    %v2324 = vpop.f32.mrb[0].mxu0
    %2325 = vdwg.mxu0
    %2326 = vmatprep.subr.mxu0 0.0
    %v2327 = vand.u32 %v200, 4294901760
    %v2328 = vsub.f32 %v200, %v2327
    %v2329 = vand.u32 %v2328, 4294901760
    %2330 = vmatpush1.msra.mxu0 %v2329
    %2331 = vmatprep.subr.mxu0 0.0
    %v2332 = vand.u32 %v201, 4294901760
    %v2333 = vsub.f32 %v201, %v2332
    %v2334 = vand.u32 %v2333, 4294901760
    %2335 = vmatpush1.msra.mxu0 %v2334
    %2336 = vmatprep.subr.mxu0 0.0
    %v2337 = vand.u32 %v202, 4294901760
    %v2338 = vsub.f32 %v202, %v2337
    %v2339 = vand.u32 %v2338, 4294901760
    %2340 = vmatpush1.msra.mxu0 %v2339
    %2341 = vmatprep.subr.mxu0 0.0
    %v2342 = vand.u32 %v203, 4294901760
    %v2343 = vsub.f32 %v203, %v2342
    %v2344 = vand.u32 %v2343, 4294901760
    %2345 = vmatpush1.msra.mxu0 %v2344
    %2346 = vmatprep.subr.mxu0 0.0
    %v2347 = vand.u32 %v204, 4294901760
    %v2348 = vsub.f32 %v204, %v2347
    %v2349 = vand.u32 %v2348, 4294901760
    %2350 = vmatpush1.msra.mxu0 %v2349
    %2351 = vmatprep.subr.mxu0 0.0
    %v2352 = vand.u32 %v205, 4294901760
    %v2353 = vsub.f32 %v205, %v2352
    %v2354 = vand.u32 %v2353, 4294901760
    %2355 = vmatpush1.msra.mxu0 %v2354
    %2356 = vmatprep.subr.mxu0 0.0
    %v2357 = vand.u32 %v206, 4294901760
    %v2358 = vsub.f32 %v206, %v2357
    %v2359 = vand.u32 %v2358, 4294901760
    %2360 = vmatpush1.msra.mxu0 %v2359
    %2361 = vmatprep.subr.mxu0 0.0
    %v2362 = vand.u32 %v207, 4294901760
    %v2363 = vsub.f32 %v207, %v2362
    %v2364 = vand.u32 %v2363, 4294901760
    %2365 = vmatpush1.msra.mxu0 %v2364
    %2366 = vmatprep.subr.mxu0 0.0
    %v2367 = vand.u32 %v208, 4294901760
    %v2368 = vsub.f32 %v208, %v2367
    %v2369 = vand.u32 %v2368, 4294901760
    %2370 = vmatpush1.msra.mxu0 %v2369
    %2371 = vmatprep.subr.mxu0 0.0
    %v2372 = vand.u32 %v209, 4294901760
    %v2373 = vsub.f32 %v209, %v2372
    %v2374 = vand.u32 %v2373, 4294901760
    %2375 = vmatpush1.msra.mxu0 %v2374
    %2376 = vmatprep.subr.mxu0 0.0
    %v2377 = vand.u32 %v210, 4294901760
    %v2378 = vsub.f32 %v210, %v2377
    %v2379 = vand.u32 %v2378, 4294901760
    %2380 = vmatpush1.msra.mxu0 %v2379
    %2381 = vmatprep.subr.mxu0 0.0
    %v2382 = vand.u32 %v211, 4294901760
    %v2383 = vsub.f32 %v211, %v2382
    %v2384 = vand.u32 %v2383, 4294901760
    %2385 = vmatpush1.msra.mxu0 %v2384
    %2386 = vmatprep.subr.mxu0 0.0
    %v2387 = vand.u32 %v212, 4294901760
    %v2388 = vsub.f32 %v212, %v2387
    %v2389 = vand.u32 %v2388, 4294901760
    %2390 = vmatpush1.msra.mxu0 %v2389
    %2391 = vmatprep.subr.mxu0 0.0
    %v2392 = vand.u32 %v213, 4294901760
    %v2393 = vsub.f32 %v213, %v2392
    %v2394 = vand.u32 %v2393, 4294901760
    %2395 = vmatpush1.msra.mxu0 %v2394
    %2396 = vmatprep.subr.mxu0 0.0
    %v2397 = vand.u32 %v214, 4294901760
    %v2398 = vsub.f32 %v214, %v2397
    %v2399 = vand.u32 %v2398, 4294901760
    %2400 = vmatpush1.msra.mxu0 %v2399
    %2401 = vmatprep.subr.mxu0 0.0
    %v2402 = vand.u32 %v215, 4294901760
    %v2403 = vsub.f32 %v215, %v2402
    %v2404 = vand.u32 %v2403, 4294901760
    %2405 = vmatpush1.msra.mxu0 %v2404
    %2406 = vmatprep.subr.mxu0 0.0
    %v2407 = vand.u32 %v216, 4294901760
    %v2408 = vsub.f32 %v216, %v2407
    %v2409 = vand.u32 %v2408, 4294901760
    %2410 = vmatpush1.msra.mxu0 %v2409
    %2411 = vmatprep.subr.mxu0 0.0
    %v2412 = vand.u32 %v217, 4294901760
    %v2413 = vsub.f32 %v217, %v2412
    %v2414 = vand.u32 %v2413, 4294901760
    %2415 = vmatpush1.msra.mxu0 %v2414
    %2416 = vmatprep.subr.mxu0 0.0
    %v2417 = vand.u32 %v218, 4294901760
    %v2418 = vsub.f32 %v218, %v2417
    %v2419 = vand.u32 %v2418, 4294901760
    %2420 = vmatpush1.msra.mxu0 %v2419
    %2421 = vmatprep.subr.mxu0 0.0
    %v2422 = vand.u32 %v219, 4294901760
    %v2423 = vsub.f32 %v219, %v2422
    %v2424 = vand.u32 %v2423, 4294901760
    %2425 = vmatpush1.msra.mxu0 %v2424
    %2426 = vmatprep.subr.mxu0 0.0
    %v2427 = vand.u32 %v220, 4294901760
    %v2428 = vsub.f32 %v220, %v2427
    %v2429 = vand.u32 %v2428, 4294901760
    %2430 = vmatpush1.msra.mxu0 %v2429
    %2431 = vmatprep.subr.mxu0 0.0
    %v2432 = vand.u32 %v221, 4294901760
    %v2433 = vsub.f32 %v221, %v2432
    %v2434 = vand.u32 %v2433, 4294901760
    %2435 = vmatpush1.msra.mxu0 %v2434
    %2436 = vmatprep.subr.mxu0 0.0
    %v2437 = vand.u32 %v222, 4294901760
    %v2438 = vsub.f32 %v222, %v2437
    %v2439 = vand.u32 %v2438, 4294901760
    %2440 = vmatpush1.msra.mxu0 %v2439
    %2441 = vmatprep.subr.mxu0 0.0
    %v2442 = vand.u32 %v223, 4294901760
    %v2443 = vsub.f32 %v223, %v2442
    %v2444 = vand.u32 %v2443, 4294901760
    %2445 = vmatpush1.msra.mxu0 %v2444
    %2446 = vmatprep.subr.mxu0 0.0
    %v2447 = vand.u32 %v224, 4294901760
    %v2448 = vsub.f32 %v224, %v2447
    %v2449 = vand.u32 %v2448, 4294901760
    %2450 = vmatpush1.msra.mxu0 %v2449
    %2451 = vmatprep.subr.mxu0 0.0
    %v2452 = vand.u32 %v225, 4294901760
    %v2453 = vsub.f32 %v225, %v2452
    %v2454 = vand.u32 %v2453, 4294901760
    %2455 = vmatpush1.msra.mxu0 %v2454
    %2456 = vmatprep.subr.mxu0 0.0
    %v2457 = vand.u32 %v226, 4294901760
    %v2458 = vsub.f32 %v226, %v2457
    %v2459 = vand.u32 %v2458, 4294901760
    %2460 = vmatpush1.msra.mxu0 %v2459
    %2461 = vmatprep.subr.mxu0 0.0
    %v2462 = vand.u32 %v227, 4294901760
    %v2463 = vsub.f32 %v227, %v2462
    %v2464 = vand.u32 %v2463, 4294901760
    %2465 = vmatpush1.msra.mxu0 %v2464
    %2466 = vmatprep.subr.mxu0 0.0
    %v2467 = vand.u32 %v228, 4294901760
    %v2468 = vsub.f32 %v228, %v2467
    %v2469 = vand.u32 %v2468, 4294901760
    %2470 = vmatpush1.msra.mxu0 %v2469
    %2471 = vmatprep.subr.mxu0 0.0
    %v2472 = vand.u32 %v229, 4294901760
    %v2473 = vsub.f32 %v229, %v2472
    %v2474 = vand.u32 %v2473, 4294901760
    %2475 = vmatpush1.msra.mxu0 %v2474
    %2476 = vmatprep.subr.mxu0 0.0
    %v2477 = vand.u32 %v230, 4294901760
    %v2478 = vsub.f32 %v230, %v2477
    %v2479 = vand.u32 %v2478, 4294901760
    %2480 = vmatpush1.msra.mxu0 %v2479
    %2481 = vmatprep.subr.mxu0 0.0
    %v2482 = vand.u32 %v231, 4294901760
    %v2483 = vsub.f32 %v231, %v2482
    %v2484 = vand.u32 %v2483, 4294901760
    %2485 = vmatpush1.msra.mxu0 %v2484
    %v2486 = vand.u32 %v1691, 4294901760
    %2487 = vmatprep.mubr.f32.mxu0 %v2486
    %v2488 = vand.u32 %v1690, 4294901760
    %2489 = vmatmul.mubr.f32.gmra.mrb[0].mxu0 %v2488
    %v2490 = vpop.f32.mrb[0].mxu0
    %v2491 = vadd.f32 %v2312, %v2490
    %v2492 = vpop.f32.mrb[0].mxu0
    %v2493 = vand.u32 %v1693, 4294901760
    %2494 = vmatprep.mubr.f32.mxu0 %v2493
    %v2495 = vand.u32 %v1692, 4294901760
    %2496 = vmatmul.mubr.f32.gmra.mrb[0].mxu0 %v2495
    %v2497 = vpop.f32.mrb[0].mxu0
    %v2498 = vadd.f32 %v2323, %v2497
    %v2499 = vpop.f32.mrb[0].mxu0
    %2500 = vdwg.mxu0
    %2501 = vmatprep.subr.mxu0 0.0
    %v2502 = vand.u32 %v200, 4294901760
    %2503 = vmatpush1.msra.mxu0 %v2502
    %2504 = vmatprep.subr.mxu0 0.0
    %v2505 = vand.u32 %v201, 4294901760
    %2506 = vmatpush1.msra.mxu0 %v2505
    %2507 = vmatprep.subr.mxu0 0.0
    %v2508 = vand.u32 %v202, 4294901760
    %2509 = vmatpush1.msra.mxu0 %v2508
    %2510 = vmatprep.subr.mxu0 0.0
    %v2511 = vand.u32 %v203, 4294901760
    %2512 = vmatpush1.msra.mxu0 %v2511
    %2513 = vmatprep.subr.mxu0 0.0
    %v2514 = vand.u32 %v204, 4294901760
    %2515 = vmatpush1.msra.mxu0 %v2514
    %2516 = vmatprep.subr.mxu0 0.0
    %v2517 = vand.u32 %v205, 4294901760
    %2518 = vmatpush1.msra.mxu0 %v2517
    %2519 = vmatprep.subr.mxu0 0.0
    %v2520 = vand.u32 %v206, 4294901760
    %2521 = vmatpush1.msra.mxu0 %v2520
    %2522 = vmatprep.subr.mxu0 0.0
    %v2523 = vand.u32 %v207, 4294901760
    %2524 = vmatpush1.msra.mxu0 %v2523
    %2525 = vmatprep.subr.mxu0 0.0
    %v2526 = vand.u32 %v208, 4294901760
    %2527 = vmatpush1.msra.mxu0 %v2526
    %2528 = vmatprep.subr.mxu0 0.0
    %v2529 = vand.u32 %v209, 4294901760
    %2530 = vmatpush1.msra.mxu0 %v2529
    %2531 = vmatprep.subr.mxu0 0.0
    %v2532 = vand.u32 %v210, 4294901760
    %2533 = vmatpush1.msra.mxu0 %v2532
    %2534 = vmatprep.subr.mxu0 0.0
    %v2535 = vand.u32 %v211, 4294901760
    %2536 = vmatpush1.msra.mxu0 %v2535
    %2537 = vmatprep.subr.mxu0 0.0
    %v2538 = vand.u32 %v212, 4294901760
    %2539 = vmatpush1.msra.mxu0 %v2538
    %2540 = vmatprep.subr.mxu0 0.0
    %v2541 = vand.u32 %v213, 4294901760
    %2542 = vmatpush1.msra.mxu0 %v2541
    %2543 = vmatprep.subr.mxu0 0.0
    %v2544 = vand.u32 %v214, 4294901760
    %2545 = vmatpush1.msra.mxu0 %v2544
    %2546 = vmatprep.subr.mxu0 0.0
    %v2547 = vand.u32 %v215, 4294901760
    %2548 = vmatpush1.msra.mxu0 %v2547
    %2549 = vmatprep.subr.mxu0 0.0
    %v2550 = vand.u32 %v216, 4294901760
    %2551 = vmatpush1.msra.mxu0 %v2550
    %2552 = vmatprep.subr.mxu0 0.0
    %v2553 = vand.u32 %v217, 4294901760
    %2554 = vmatpush1.msra.mxu0 %v2553
    %2555 = vmatprep.subr.mxu0 0.0
    %v2556 = vand.u32 %v218, 4294901760
    %2557 = vmatpush1.msra.mxu0 %v2556
    %2558 = vmatprep.subr.mxu0 0.0
    %v2559 = vand.u32 %v219, 4294901760
    %2560 = vmatpush1.msra.mxu0 %v2559
    %2561 = vmatprep.subr.mxu0 0.0
    %v2562 = vand.u32 %v220, 4294901760
    %2563 = vmatpush1.msra.mxu0 %v2562
    %2564 = vmatprep.subr.mxu0 0.0
    %v2565 = vand.u32 %v221, 4294901760
    %2566 = vmatpush1.msra.mxu0 %v2565
    %2567 = vmatprep.subr.mxu0 0.0
    %v2568 = vand.u32 %v222, 4294901760
    %2569 = vmatpush1.msra.mxu0 %v2568
    %2570 = vmatprep.subr.mxu0 0.0
    %v2571 = vand.u32 %v223, 4294901760
    %2572 = vmatpush1.msra.mxu0 %v2571
    %2573 = vmatprep.subr.mxu0 0.0
    %v2574 = vand.u32 %v224, 4294901760
    %2575 = vmatpush1.msra.mxu0 %v2574
    %2576 = vmatprep.subr.mxu0 0.0
    %v2577 = vand.u32 %v225, 4294901760
    %2578 = vmatpush1.msra.mxu0 %v2577
    %2579 = vmatprep.subr.mxu0 0.0
    %v2580 = vand.u32 %v226, 4294901760
    %2581 = vmatpush1.msra.mxu0 %v2580
    %2582 = vmatprep.subr.mxu0 0.0
    %v2583 = vand.u32 %v227, 4294901760
    %2584 = vmatpush1.msra.mxu0 %v2583
    %2585 = vmatprep.subr.mxu0 0.0
    %v2586 = vand.u32 %v228, 4294901760
    %2587 = vmatpush1.msra.mxu0 %v2586
    %2588 = vmatprep.subr.mxu0 0.0
    %v2589 = vand.u32 %v229, 4294901760
    %2590 = vmatpush1.msra.mxu0 %v2589
    %2591 = vmatprep.subr.mxu0 0.0
    %v2592 = vand.u32 %v230, 4294901760
    %2593 = vmatpush1.msra.mxu0 %v2592
    %2594 = vmatprep.subr.mxu0 0.0
    %v2595 = vand.u32 %v231, 4294901760
    %2596 = vmatpush1.msra.mxu0 %v2595
    %v2597 = vand.u32 %v1691, 4294901760
    %2598 = vmatprep.mubr.f32.mxu0 %v2597
    %v2599 = vand.u32 %v1690, 4294901760
    %2600 = vmatmul.mubr.f32.gmra.mrb[0].mxu0 %v2599
    %v2601 = vpop.f32.mrb[0].mxu0
    %v2602 = vadd.f32 %v2491, %v2601
    %v2603 = vpop.f32.mrb[0].mxu0
    %v2604 = vand.u32 %v1693, 4294901760
    %2605 = vmatprep.mubr.f32.mxu0 %v2604
    %v2606 = vand.u32 %v1692, 4294901760
    %2607 = vmatmul.mubr.f32.gmra.mrb[0].mxu0 %v2606
    %v2608 = vpop.f32.mrb[0].mxu0
    %v2609 = vadd.f32 %v2498, %v2608
    %v2610 = vpop.f32.mrb[0].mxu0
    %2611 = vdwg.mxu0
    %v2612 = vmul.f32 %v2602, 0.03125
    %v2613 = vmul.f32 %v2609, 0.03125
    %v2615 = vsel %vm1165, %v2612, 0
    %v2618 = vsel %vm1165, %v2613, 0
    %v2620 = vand.u32 %v244, 4294901760
    %2621 = vmatprep.subr.mxu0 %v2620
    %v2622 = vand.u32 %v243, 4294901760
    %2623 = vmatpush1.msra.mxu0 %v2622
    %2624 = vmatprep.subr.mxu0 0.0
    %2625 = vmatpush1.msra.mxu0 0.0
    %2626 = vmatprep.subr.mxu0 0.0
    %2627 = vmatpush1.msra.mxu0 0.0
    %2628 = vmatprep.subr.mxu0 0.0
    %2629 = vmatpush1.msra.mxu0 0.0
    %2630 = vmatprep.subr.mxu0 0.0
    %2631 = vmatpush1.msra.mxu0 0.0
    %2632 = vmatprep.subr.mxu0 0.0
    %2633 = vmatpush1.msra.mxu0 0.0
    %2634 = vmatprep.subr.mxu0 0.0
    %2635 = vmatpush1.msra.mxu0 0.0
    %2636 = vmatprep.subr.mxu0 0.0
    %2637 = vmatpush1.msra.mxu0 0.0
    %2638 = vmatprep.subr.mxu0 0.0
    %2639 = vmatpush1.msra.mxu0 0.0
    %2640 = vmatprep.subr.mxu0 0.0
    %2641 = vmatpush1.msra.mxu0 0.0
    %2642 = vmatprep.subr.mxu0 0.0
    %2643 = vmatpush1.msra.mxu0 0.0
    %2644 = vmatprep.subr.mxu0 0.0
    %2645 = vmatpush1.msra.mxu0 0.0
    %2646 = vmatprep.subr.mxu0 0.0
    %2647 = vmatpush1.msra.mxu0 0.0
    %2648 = vmatprep.subr.mxu0 0.0
    %2649 = vmatpush1.msra.mxu0 0.0
    %2650 = vmatprep.subr.mxu0 0.0
    %2651 = vmatpush1.msra.mxu0 0.0
    %2652 = vmatprep.subr.mxu0 0.0
    %2653 = vmatpush1.msra.mxu0 0.0
    %2654 = vmatprep.subr.mxu0 0.0
    %2655 = vmatpush1.msra.mxu0 0.0
    %2656 = vmatprep.subr.mxu0 0.0
    %2657 = vmatpush1.msra.mxu0 0.0
    %2658 = vmatprep.subr.mxu0 0.0
    %2659 = vmatpush1.msra.mxu0 0.0
    %2660 = vmatprep.subr.mxu0 0.0
    %2661 = vmatpush1.msra.mxu0 0.0
    %2662 = vmatprep.subr.mxu0 0.0
    %2663 = vmatpush1.msra.mxu0 0.0
    %2664 = vmatprep.subr.mxu0 0.0
    %2665 = vmatpush1.msra.mxu0 0.0
    %2666 = vmatprep.subr.mxu0 0.0
    %2667 = vmatpush1.msra.mxu0 0.0
    %2668 = vmatprep.subr.mxu0 0.0
    %2669 = vmatpush1.msra.mxu0 0.0
    %2670 = vmatprep.subr.mxu0 0.0
    %2671 = vmatpush1.msra.mxu0 0.0
    %2672 = vmatprep.subr.mxu0 0.0
    %2673 = vmatpush1.msra.mxu0 0.0
    %2674 = vmatprep.subr.mxu0 0.0
    %2675 = vmatpush1.msra.mxu0 0.0
    %2676 = vmatprep.subr.mxu0 0.0
    %2677 = vmatpush1.msra.mxu0 0.0
    %2678 = vmatprep.subr.mxu0 0.0
    %2679 = vmatpush1.msra.mxu0 0.0
    %2680 = vmatprep.subr.mxu0 0.0
    %2681 = vmatpush1.msra.mxu0 0.0
    %2682 = vmatprep.subr.mxu0 0.0
    %2683 = vmatpush1.msra.mxu0 0.0
    %2684 = vmatprep.subr.mxu0 0.0
    %2685 = vmatpush1.msra.mxu0 0.0
    %2686 = vmatprep.mubr.f32.mxu0 0.0
    %v2687 = vand.u32 %v2615, 4294901760
    %v2688 = vsub.f32 %v2615, %v2687
    %v2689 = vand.u32 %v2688, 4294901760
    %v2690 = vsub.f32 %v2688, %v2689
    %v2691 = vand.u32 %v2690, 4294901760
    %2692 = vmatmul.mubr.f32.gmra.mrb[0].mxu0 %v2691
    %v2693 = vpop.f32.mrb[0].mxu0
    %v2694 = vadd.f32 1e-05, %v2693
    %v2695 = vpop.f32.mrb[0].mxu0
    %v2696 = vadd.f32 1e-05, %v2695
    %2697 = vmatprep.mubr.f32.mxu0 0.0
    %v2698 = vand.u32 %v2618, 4294901760
    %v2699 = vsub.f32 %v2618, %v2698
    %v2700 = vand.u32 %v2699, 4294901760
    %v2701 = vsub.f32 %v2699, %v2700
    %v2702 = vand.u32 %v2701, 4294901760
    %2703 = vmatmul.mubr.f32.gmra.mrb[0].mxu0 %v2702
    %v2704 = vpop.f32.mrb[0].mxu0
    %v2705 = vadd.f32 1e-05, %v2704
    %v2706 = vpop.f32.mrb[0].mxu0
    %v2707 = vadd.f32 1e-05, %v2706
    %2708 = vdwg.mxu0
    %v2709 = vand.u32 %v244, 4294901760
    %v2710 = vsub.f32 %v244, %v2709
    %v2711 = vand.u32 %v2710, 4294901760
    %v2712 = vsub.f32 %v2710, %v2711
    %v2713 = vand.u32 %v2712, 4294901760
    %2714 = vmatprep.subr.mxu0 %v2713
    %v2715 = vand.u32 %v243, 4294901760
    %v2716 = vsub.f32 %v243, %v2715
    %v2717 = vand.u32 %v2716, 4294901760
    %v2718 = vsub.f32 %v2716, %v2717
    %v2719 = vand.u32 %v2718, 4294901760
    %2720 = vmatpush1.msra.mxu0 %v2719
    %2721 = vmatprep.subr.mxu0 0.0
    %2722 = vmatpush1.msra.mxu0 0.0
    %2723 = vmatprep.subr.mxu0 0.0
    %2724 = vmatpush1.msra.mxu0 0.0
    %2725 = vmatprep.subr.mxu0 0.0
    %2726 = vmatpush1.msra.mxu0 0.0
    %2727 = vmatprep.subr.mxu0 0.0
    %2728 = vmatpush1.msra.mxu0 0.0
    %2729 = vmatprep.subr.mxu0 0.0
    %2730 = vmatpush1.msra.mxu0 0.0
    %2731 = vmatprep.subr.mxu0 0.0
    %2732 = vmatpush1.msra.mxu0 0.0
    %2733 = vmatprep.subr.mxu0 0.0
    %2734 = vmatpush1.msra.mxu0 0.0
    %2735 = vmatprep.subr.mxu0 0.0
    %2736 = vmatpush1.msra.mxu0 0.0
    %2737 = vmatprep.subr.mxu0 0.0
    %2738 = vmatpush1.msra.mxu0 0.0
    %2739 = vmatprep.subr.mxu0 0.0
    %2740 = vmatpush1.msra.mxu0 0.0
    %2741 = vmatprep.subr.mxu0 0.0
    %2742 = vmatpush1.msra.mxu0 0.0
    %2743 = vmatprep.subr.mxu0 0.0
    %2744 = vmatpush1.msra.mxu0 0.0
    %2745 = vmatprep.subr.mxu0 0.0
    %2746 = vmatpush1.msra.mxu0 0.0
    %2747 = vmatprep.subr.mxu0 0.0
    %2748 = vmatpush1.msra.mxu0 0.0
    %2749 = vmatprep.subr.mxu0 0.0
    %2750 = vmatpush1.msra.mxu0 0.0
    %2751 = vmatprep.subr.mxu0 0.0
    %2752 = vmatpush1.msra.mxu0 0.0
    %2753 = vmatprep.subr.mxu0 0.0
    %2754 = vmatpush1.msra.mxu0 0.0
    %2755 = vmatprep.subr.mxu0 0.0
    %2756 = vmatpush1.msra.mxu0 0.0
    %2757 = vmatprep.subr.mxu0 0.0
    %2758 = vmatpush1.msra.mxu0 0.0
    %2759 = vmatprep.subr.mxu0 0.0
    %2760 = vmatpush1.msra.mxu0 0.0
    %2761 = vmatprep.subr.mxu0 0.0
    %2762 = vmatpush1.msra.mxu0 0.0
    %2763 = vmatprep.subr.mxu0 0.0
    %2764 = vmatpush1.msra.mxu0 0.0
    %2765 = vmatprep.subr.mxu0 0.0
    %2766 = vmatpush1.msra.mxu0 0.0
    %2767 = vmatprep.subr.mxu0 0.0
    %2768 = vmatpush1.msra.mxu0 0.0
    %2769 = vmatprep.subr.mxu0 0.0
    %2770 = vmatpush1.msra.mxu0 0.0
    %2771 = vmatprep.subr.mxu0 0.0
    %2772 = vmatpush1.msra.mxu0 0.0
    %2773 = vmatprep.subr.mxu0 0.0
    %2774 = vmatpush1.msra.mxu0 0.0
    %2775 = vmatprep.subr.mxu0 0.0
    %2776 = vmatpush1.msra.mxu0 0.0
    %2777 = vmatprep.subr.mxu0 0.0
    %2778 = vmatpush1.msra.mxu0 0.0
    %2779 = vmatprep.subr.mxu0 0.0
    %2780 = vmatpush1.msra.mxu0 0.0
    %2781 = vmatprep.subr.mxu0 0.0
    %2782 = vmatpush1.msra.mxu0 0.0
    %2783 = vmatprep.mubr.f32.mxu0 0.0
    %v2784 = vand.u32 %v2615, 4294901760
    %2785 = vmatmul.mubr.f32.gmra.mrb[0].mxu0 %v2784
    %v2786 = vpop.f32.mrb[0].mxu0
    %v2787 = vadd.f32 %v2694, %v2786
    %v2788 = vpop.f32.mrb[0].mxu0
    %v2789 = vadd.f32 %v2696, %v2788
    %2790 = vmatprep.mubr.f32.mxu0 0.0
    %v2791 = vand.u32 %v2618, 4294901760
    %2792 = vmatmul.mubr.f32.gmra.mrb[0].mxu0 %v2791
    %v2793 = vpop.f32.mrb[0].mxu0
    %v2794 = vadd.f32 %v2705, %v2793
    %v2795 = vpop.f32.mrb[0].mxu0
    %v2796 = vadd.f32 %v2707, %v2795
    %2797 = vdwg.mxu0
    %v2798 = vand.u32 %v244, 4294901760
    %v2799 = vsub.f32 %v244, %v2798
    %2800 = vmatprep.subr.mxu0 %v2799
    %v2801 = vand.u32 %v243, 4294901760
    %v2802 = vsub.f32 %v243, %v2801
    %2803 = vmatpush1.msra.mxu0 %v2802
    %2804 = vmatprep.subr.mxu0 0.0
    %2805 = vmatpush1.msra.mxu0 0.0
    %2806 = vmatprep.subr.mxu0 0.0
    %2807 = vmatpush1.msra.mxu0 0.0
    %2808 = vmatprep.subr.mxu0 0.0
    %2809 = vmatpush1.msra.mxu0 0.0
    %2810 = vmatprep.subr.mxu0 0.0
    %2811 = vmatpush1.msra.mxu0 0.0
    %2812 = vmatprep.subr.mxu0 0.0
    %2813 = vmatpush1.msra.mxu0 0.0
    %2814 = vmatprep.subr.mxu0 0.0
    %2815 = vmatpush1.msra.mxu0 0.0
    %2816 = vmatprep.subr.mxu0 0.0
    %2817 = vmatpush1.msra.mxu0 0.0
    %2818 = vmatprep.subr.mxu0 0.0
    %2819 = vmatpush1.msra.mxu0 0.0
    %2820 = vmatprep.subr.mxu0 0.0
    %2821 = vmatpush1.msra.mxu0 0.0
    %2822 = vmatprep.subr.mxu0 0.0
    %2823 = vmatpush1.msra.mxu0 0.0
    %2824 = vmatprep.subr.mxu0 0.0
    %2825 = vmatpush1.msra.mxu0 0.0
    %2826 = vmatprep.subr.mxu0 0.0
    %2827 = vmatpush1.msra.mxu0 0.0
    %2828 = vmatprep.subr.mxu0 0.0
    %2829 = vmatpush1.msra.mxu0 0.0
    %2830 = vmatprep.subr.mxu0 0.0
    %2831 = vmatpush1.msra.mxu0 0.0
    %2832 = vmatprep.subr.mxu0 0.0
    %2833 = vmatpush1.msra.mxu0 0.0
    %2834 = vmatprep.subr.mxu0 0.0
    %2835 = vmatpush1.msra.mxu0 0.0
    %2836 = vmatprep.subr.mxu0 0.0
    %2837 = vmatpush1.msra.mxu0 0.0
    %2838 = vmatprep.subr.mxu0 0.0
    %2839 = vmatpush1.msra.mxu0 0.0
    %2840 = vmatprep.subr.mxu0 0.0
    %2841 = vmatpush1.msra.mxu0 0.0
    %2842 = vmatprep.subr.mxu0 0.0
    %2843 = vmatpush1.msra.mxu0 0.0
    %2844 = vmatprep.subr.mxu0 0.0
    %2845 = vmatpush1.msra.mxu0 0.0
    %2846 = vmatprep.subr.mxu0 0.0
    %2847 = vmatpush1.msra.mxu0 0.0
    %2848 = vmatprep.subr.mxu0 0.0
    %2849 = vmatpush1.msra.mxu0 0.0
    %2850 = vmatprep.subr.mxu0 0.0
    %2851 = vmatpush1.msra.mxu0 0.0
    %2852 = vmatprep.subr.mxu0 0.0
    %2853 = vmatpush1.msra.mxu0 0.0
    %2854 = vmatprep.subr.mxu0 0.0
    %2855 = vmatpush1.msra.mxu0 0.0
    %2856 = vmatprep.subr.mxu0 0.0
    %2857 = vmatpush1.msra.mxu0 0.0
    %2858 = vmatprep.subr.mxu0 0.0
    %2859 = vmatpush1.msra.mxu0 0.0
    %2860 = vmatprep.subr.mxu0 0.0
    %2861 = vmatpush1.msra.mxu0 0.0
    %2862 = vmatprep.subr.mxu0 0.0
    %2863 = vmatpush1.msra.mxu0 0.0
    %2864 = vmatprep.subr.mxu0 0.0
    %2865 = vmatpush1.msra.mxu0 0.0
    %2866 = vmatprep.mubr.f32.mxu0 0.0
    %v2867 = vand.u32 %v2615, 4294901760
    %v2868 = vsub.f32 %v2615, %v2867
    %2869 = vmatmul.mubr.f32.gmra.mrb[0].mxu0 %v2868
    %v2870 = vpop.f32.mrb[0].mxu0
    %v2871 = vadd.f32 %v2787, %v2870
    %v2872 = vpop.f32.mrb[0].mxu0
    %v2873 = vadd.f32 %v2789, %v2872
    %2874 = vmatprep.mubr.f32.mxu0 0.0
    %v2875 = vand.u32 %v2618, 4294901760
    %v2876 = vsub.f32 %v2618, %v2875
    %2877 = vmatmul.mubr.f32.gmra.mrb[0].mxu0 %v2876
    %v2878 = vpop.f32.mrb[0].mxu0
    %v2879 = vadd.f32 %v2794, %v2878
    %v2880 = vpop.f32.mrb[0].mxu0
    %v2881 = vadd.f32 %v2796, %v2880
    %2882 = vdwg.mxu0
    %v2883 = vand.u32 %v244, 4294901760
    %2884 = vmatprep.subr.mxu0 %v2883
    %v2885 = vand.u32 %v243, 4294901760
    %2886 = vmatpush1.msra.mxu0 %v2885
    %2887 = vmatprep.subr.mxu0 0.0
    %2888 = vmatpush1.msra.mxu0 0.0
    %2889 = vmatprep.subr.mxu0 0.0
    %2890 = vmatpush1.msra.mxu0 0.0
    %2891 = vmatprep.subr.mxu0 0.0
    %2892 = vmatpush1.msra.mxu0 0.0
    %2893 = vmatprep.subr.mxu0 0.0
    %2894 = vmatpush1.msra.mxu0 0.0
    %2895 = vmatprep.subr.mxu0 0.0
    %2896 = vmatpush1.msra.mxu0 0.0
    %2897 = vmatprep.subr.mxu0 0.0
    %2898 = vmatpush1.msra.mxu0 0.0
    %2899 = vmatprep.subr.mxu0 0.0
    %2900 = vmatpush1.msra.mxu0 0.0
    %2901 = vmatprep.subr.mxu0 0.0
    %2902 = vmatpush1.msra.mxu0 0.0
    %2903 = vmatprep.subr.mxu0 0.0
    %2904 = vmatpush1.msra.mxu0 0.0
    %2905 = vmatprep.subr.mxu0 0.0
    %2906 = vmatpush1.msra.mxu0 0.0
    %2907 = vmatprep.subr.mxu0 0.0
    %2908 = vmatpush1.msra.mxu0 0.0
    %2909 = vmatprep.subr.mxu0 0.0
    %2910 = vmatpush1.msra.mxu0 0.0
    %2911 = vmatprep.subr.mxu0 0.0
    %2912 = vmatpush1.msra.mxu0 0.0
    %2913 = vmatprep.subr.mxu0 0.0
    %2914 = vmatpush1.msra.mxu0 0.0
    %2915 = vmatprep.subr.mxu0 0.0
    %2916 = vmatpush1.msra.mxu0 0.0
    %2917 = vmatprep.subr.mxu0 0.0
    %2918 = vmatpush1.msra.mxu0 0.0
    %2919 = vmatprep.subr.mxu0 0.0
    %2920 = vmatpush1.msra.mxu0 0.0
    %2921 = vmatprep.subr.mxu0 0.0
    %2922 = vmatpush1.msra.mxu0 0.0
    %2923 = vmatprep.subr.mxu0 0.0
    %2924 = vmatpush1.msra.mxu0 0.0
    %2925 = vmatprep.subr.mxu0 0.0
    %2926 = vmatpush1.msra.mxu0 0.0
    %2927 = vmatprep.subr.mxu0 0.0
    %2928 = vmatpush1.msra.mxu0 0.0
    %2929 = vmatprep.subr.mxu0 0.0
    %2930 = vmatpush1.msra.mxu0 0.0
    %2931 = vmatprep.subr.mxu0 0.0
    %2932 = vmatpush1.msra.mxu0 0.0
    %2933 = vmatprep.subr.mxu0 0.0
    %2934 = vmatpush1.msra.mxu0 0.0
    %2935 = vmatprep.subr.mxu0 0.0
    %2936 = vmatpush1.msra.mxu0 0.0
    %2937 = vmatprep.subr.mxu0 0.0
    %2938 = vmatpush1.msra.mxu0 0.0
    %2939 = vmatprep.subr.mxu0 0.0
    %2940 = vmatpush1.msra.mxu0 0.0
    %2941 = vmatprep.subr.mxu0 0.0
    %2942 = vmatpush1.msra.mxu0 0.0
    %2943 = vmatprep.subr.mxu0 0.0
    %2944 = vmatpush1.msra.mxu0 0.0
    %2945 = vmatprep.subr.mxu0 0.0
    %2946 = vmatpush1.msra.mxu0 0.0
    %2947 = vmatprep.subr.mxu0 0.0
    %2948 = vmatpush1.msra.mxu0 0.0
    %2949 = vmatprep.mubr.f32.mxu0 0.0
    %v2950 = vand.u32 %v2615, 4294901760
    %v2951 = vsub.f32 %v2615, %v2950
    %v2952 = vand.u32 %v2951, 4294901760
    %2953 = vmatmul.mubr.f32.gmra.mrb[0].mxu0 %v2952
    %v2954 = vpop.f32.mrb[0].mxu0
    %v2955 = vadd.f32 %v2871, %v2954
    %v2956 = vpop.f32.mrb[0].mxu0
    %v2957 = vadd.f32 %v2873, %v2956
    %2958 = vmatprep.mubr.f32.mxu0 0.0
    %v2959 = vand.u32 %v2618, 4294901760
    %v2960 = vsub.f32 %v2618, %v2959
    %v2961 = vand.u32 %v2960, 4294901760
    %2962 = vmatmul.mubr.f32.gmra.mrb[0].mxu0 %v2961
    %v2963 = vpop.f32.mrb[0].mxu0
    %v2964 = vadd.f32 %v2879, %v2963
    %v2965 = vpop.f32.mrb[0].mxu0
    %v2966 = vadd.f32 %v2881, %v2965
    %2967 = vdwg.mxu0
    %v2968 = vand.u32 %v244, 4294901760
    %v2969 = vsub.f32 %v244, %v2968
    %v2970 = vand.u32 %v2969, 4294901760
    %2971 = vmatprep.subr.mxu0 %v2970
    %v2972 = vand.u32 %v243, 4294901760
    %v2973 = vsub.f32 %v243, %v2972
    %v2974 = vand.u32 %v2973, 4294901760
    %2975 = vmatpush1.msra.mxu0 %v2974
    %2976 = vmatprep.subr.mxu0 0.0
    %2977 = vmatpush1.msra.mxu0 0.0
    %2978 = vmatprep.subr.mxu0 0.0
    %2979 = vmatpush1.msra.mxu0 0.0
    %2980 = vmatprep.subr.mxu0 0.0
    %2981 = vmatpush1.msra.mxu0 0.0
    %2982 = vmatprep.subr.mxu0 0.0
    %2983 = vmatpush1.msra.mxu0 0.0
    %2984 = vmatprep.subr.mxu0 0.0
    %2985 = vmatpush1.msra.mxu0 0.0
    %2986 = vmatprep.subr.mxu0 0.0
    %2987 = vmatpush1.msra.mxu0 0.0
    %2988 = vmatprep.subr.mxu0 0.0
    %2989 = vmatpush1.msra.mxu0 0.0
    %2990 = vmatprep.subr.mxu0 0.0
    %2991 = vmatpush1.msra.mxu0 0.0
    %2992 = vmatprep.subr.mxu0 0.0
    %2993 = vmatpush1.msra.mxu0 0.0
    %2994 = vmatprep.subr.mxu0 0.0
    %2995 = vmatpush1.msra.mxu0 0.0
    %2996 = vmatprep.subr.mxu0 0.0
    %2997 = vmatpush1.msra.mxu0 0.0
    %2998 = vmatprep.subr.mxu0 0.0
    %2999 = vmatpush1.msra.mxu0 0.0
    %3000 = vmatprep.subr.mxu0 0.0
    %3001 = vmatpush1.msra.mxu0 0.0
    %3002 = vmatprep.subr.mxu0 0.0
    %3003 = vmatpush1.msra.mxu0 0.0
    %3004 = vmatprep.subr.mxu0 0.0
    %3005 = vmatpush1.msra.mxu0 0.0
    %3006 = vmatprep.subr.mxu0 0.0
    %3007 = vmatpush1.msra.mxu0 0.0
    %3008 = vmatprep.subr.mxu0 0.0
    %3009 = vmatpush1.msra.mxu0 0.0
    %3010 = vmatprep.subr.mxu0 0.0
    %3011 = vmatpush1.msra.mxu0 0.0
    %3012 = vmatprep.subr.mxu0 0.0
    %3013 = vmatpush1.msra.mxu0 0.0
    %3014 = vmatprep.subr.mxu0 0.0
    %3015 = vmatpush1.msra.mxu0 0.0
    %3016 = vmatprep.subr.mxu0 0.0
    %3017 = vmatpush1.msra.mxu0 0.0
    %3018 = vmatprep.subr.mxu0 0.0
    %3019 = vmatpush1.msra.mxu0 0.0
    %3020 = vmatprep.subr.mxu0 0.0
    %3021 = vmatpush1.msra.mxu0 0.0
    %3022 = vmatprep.subr.mxu0 0.0
    %3023 = vmatpush1.msra.mxu0 0.0
    %3024 = vmatprep.subr.mxu0 0.0
    %3025 = vmatpush1.msra.mxu0 0.0
    %3026 = vmatprep.subr.mxu0 0.0
    %3027 = vmatpush1.msra.mxu0 0.0
    %3028 = vmatprep.subr.mxu0 0.0
    %3029 = vmatpush1.msra.mxu0 0.0
    %3030 = vmatprep.subr.mxu0 0.0
    %3031 = vmatpush1.msra.mxu0 0.0
    %3032 = vmatprep.subr.mxu0 0.0
    %3033 = vmatpush1.msra.mxu0 0.0
    %3034 = vmatprep.subr.mxu0 0.0
    %3035 = vmatpush1.msra.mxu0 0.0
    %3036 = vmatprep.subr.mxu0 0.0
    %3037 = vmatpush1.msra.mxu0 0.0
    %3038 = vmatprep.mubr.f32.mxu0 0.0
    %v3039 = vand.u32 %v2615, 4294901760
    %3040 = vmatmul.mubr.f32.gmra.mrb[0].mxu0 %v3039
    %v3041 = vpop.f32.mrb[0].mxu0
    %v3042 = vadd.f32 %v2955, %v3041
    %v3043 = vpop.f32.mrb[0].mxu0
    %v3044 = vadd.f32 %v2957, %v3043
    %3045 = vmatprep.mubr.f32.mxu0 0.0
    %v3046 = vand.u32 %v2618, 4294901760
    %3047 = vmatmul.mubr.f32.gmra.mrb[0].mxu0 %v3046
    %v3048 = vpop.f32.mrb[0].mxu0
    %v3049 = vadd.f32 %v2964, %v3048
    %v3050 = vpop.f32.mrb[0].mxu0
    %v3051 = vadd.f32 %v2966, %v3050
    %3052 = vdwg.mxu0
    %v3053 = vand.u32 %v244, 4294901760
    %3054 = vmatprep.subr.mxu0 %v3053
    %v3055 = vand.u32 %v243, 4294901760
    %3056 = vmatpush1.msra.mxu0 %v3055
    %3057 = vmatprep.subr.mxu0 0.0
    %3058 = vmatpush1.msra.mxu0 0.0
    %3059 = vmatprep.subr.mxu0 0.0
    %3060 = vmatpush1.msra.mxu0 0.0
    %3061 = vmatprep.subr.mxu0 0.0
    %3062 = vmatpush1.msra.mxu0 0.0
    %3063 = vmatprep.subr.mxu0 0.0
    %3064 = vmatpush1.msra.mxu0 0.0
    %3065 = vmatprep.subr.mxu0 0.0
    %3066 = vmatpush1.msra.mxu0 0.0
    %3067 = vmatprep.subr.mxu0 0.0
    %3068 = vmatpush1.msra.mxu0 0.0
    %3069 = vmatprep.subr.mxu0 0.0
    %3070 = vmatpush1.msra.mxu0 0.0
    %3071 = vmatprep.subr.mxu0 0.0
    %3072 = vmatpush1.msra.mxu0 0.0
    %3073 = vmatprep.subr.mxu0 0.0
    %3074 = vmatpush1.msra.mxu0 0.0
    %3075 = vmatprep.subr.mxu0 0.0
    %3076 = vmatpush1.msra.mxu0 0.0
    %3077 = vmatprep.subr.mxu0 0.0
    %3078 = vmatpush1.msra.mxu0 0.0
    %3079 = vmatprep.subr.mxu0 0.0
    %3080 = vmatpush1.msra.mxu0 0.0
    %3081 = vmatprep.subr.mxu0 0.0
    %3082 = vmatpush1.msra.mxu0 0.0
    %3083 = vmatprep.subr.mxu0 0.0
    %3084 = vmatpush1.msra.mxu0 0.0
    %3085 = vmatprep.subr.mxu0 0.0
    %3086 = vmatpush1.msra.mxu0 0.0
    %3087 = vmatprep.subr.mxu0 0.0
    %3088 = vmatpush1.msra.mxu0 0.0
    %3089 = vmatprep.subr.mxu0 0.0
    %3090 = vmatpush1.msra.mxu0 0.0
    %3091 = vmatprep.subr.mxu0 0.0
    %3092 = vmatpush1.msra.mxu0 0.0
    %3093 = vmatprep.subr.mxu0 0.0
    %3094 = vmatpush1.msra.mxu0 0.0
    %3095 = vmatprep.subr.mxu0 0.0
    %3096 = vmatpush1.msra.mxu0 0.0
    %3097 = vmatprep.subr.mxu0 0.0
    %3098 = vmatpush1.msra.mxu0 0.0
    %3099 = vmatprep.subr.mxu0 0.0
    %3100 = vmatpush1.msra.mxu0 0.0
    %3101 = vmatprep.subr.mxu0 0.0
    %3102 = vmatpush1.msra.mxu0 0.0
    %3103 = vmatprep.subr.mxu0 0.0
    %3104 = vmatpush1.msra.mxu0 0.0
    %3105 = vmatprep.subr.mxu0 0.0
    %3106 = vmatpush1.msra.mxu0 0.0
    %3107 = vmatprep.subr.mxu0 0.0
    %3108 = vmatpush1.msra.mxu0 0.0
    %3109 = vmatprep.subr.mxu0 0.0
    %3110 = vmatpush1.msra.mxu0 0.0
    %3111 = vmatprep.subr.mxu0 0.0
    %3112 = vmatpush1.msra.mxu0 0.0
    %3113 = vmatprep.subr.mxu0 0.0
    %3114 = vmatpush1.msra.mxu0 0.0
    %3115 = vmatprep.subr.mxu0 0.0
    %3116 = vmatpush1.msra.mxu0 0.0
    %3117 = vmatprep.subr.mxu0 0.0
    %3118 = vmatpush1.msra.mxu0 0.0
    %3119 = vmatprep.mubr.f32.mxu0 0.0
    %v3120 = vand.u32 %v2615, 4294901760
    %3121 = vmatmul.mubr.f32.gmra.mrb[0].mxu0 %v3120
    %v3122 = vpop.f32.mrb[0].mxu0
    %v3123 = vadd.f32 %v3042, %v3122
    %v3124 = vpop.f32.mrb[0].mxu0
    %v3125 = vadd.f32 %v3044, %v3124
    %3126 = vmatprep.mubr.f32.mxu0 0.0
    %v3127 = vand.u32 %v2618, 4294901760
    %3128 = vmatmul.mubr.f32.gmra.mrb[0].mxu0 %v3127
    %v3129 = vpop.f32.mrb[0].mxu0
    %v3130 = vadd.f32 %v3049, %v3129
    %v3131 = vpop.f32.mrb[0].mxu0
    %v3132 = vadd.f32 %v3051, %v3131
    %3133 = vdwg.mxu0
    %v3134 = vrsqrt.pop %v3123
    %v3135 = vrsqrt.pop %v3125
    %v3136 = vrsqrt.pop %v3130
    %v3137 = vrsqrt.pop %v3132
    %v3138 = vmul.f32 %v1686, %v3134
    %v3139 = vmul.f32 %v1687, %v3135
    %v3140 = vmul.f32 %v1688, %v3136
    %v3141 = vmul.f32 %v1689, %v3137
    %v3143 = vlaneseq
    %v3144 = vshrl.u32 %v3143, 7
    %v3145 = vsub.s32 0, %v3144
    %v3146 = vrot.slane %v33, %v3145
    %v3147 = vlaneseq
    %v3148 = vshrl.u32 %v3147, 7
    %v3149 = vsub.s32 1, %v3148
    %v3150 = vrot.slane %v33, %v3149
    %v3153 = vmul.f32 %v3138, %v3146
    %v3154 = vmul.f32 %v3139, %v3150
    %v3155 = vmul.f32 %v3140, %v3146
    %v3156 = vmul.f32 %v3141, %v3150
    %v3158 = vlaneseq
    %v3159 = vshrl.u32 %v3158, 7
    %v3160 = vsub.s32 0, %v3159
    %v3161 = vrot.slane %v34, %v3160
    %v3162 = vlaneseq
    %v3163 = vshrl.u32 %v3162, 7
    %v3164 = vsub.s32 1, %v3163
    %v3165 = vrot.slane %v34, %v3164
    %v3168 = vadd.f32 %v3153, %v3161
    %v3169 = vadd.f32 %v3154, %v3165
    %v3170 = vadd.f32 %v3155, %v3161
    %v3171 = vadd.f32 %v3156, %v3165
    %3172 = vst [vmem:[#allocation5] sm:$0xff] %v3168
    %3173 = vst [vmem:[#allocation5 + $0x8] sm:$0xff] %v3169
    %3174 = vst [vmem:[#allocation5 + $0x10] sm:$0xff] %v3170
    %3175 = vst [vmem:[#allocation5 + $0x18] sm:$0xff] %v3171
    // Predicated region
    $region18: #{tpu_custom_call.1} parent=1 // pred_check
      _
    $region19: #{tpu_custom_call.1} parent=1 // pred_check_branch
      %3177 = sbr.rel (0) target = $region21
    $region20: #{tpu_custom_call.1} parent=1 // pred_region
      %s3179 = ssub.s32 512, 512
      %3180 = vsyncadd [#allocation4], %s3179
      %s3181 = sshll.u32 [#allocation5], 4
      %s3182 = int_to_ptr.vmem [resolvable:$true] %s3181
      %3187 = dma.vmem_to_hbm [thread:$0]  %s3182, 512, %s3, [#allocation4], 256, 256, 16
    $region21: #{tpu_custom_call.1} parent=1 // pred_fallthru
      _
    // Predicated region
    $region22: #{tpu_custom_call.1} parent=1 // pred_check
      _
    $region23: #{tpu_custom_call.1} parent=1 // pred_check_branch
      %3189 = sbr.rel (0) target = $region25
    $region24: #{tpu_custom_call.1} parent=1 // pred_region
      %3190 = dma.done [#allocation4], 512
    $region25: #{tpu_custom_call.1} parent=1 // pred_fallthru
      _
    %3191 = vsyncpa [#allocation3], 1
    %3192 = vsyncpa [#allocation4], 1

</llo_original>
